<compile_context>
chip_gen: v7x
topology: tpu7x:2x2x1
jax: 0.10.0
libtpu: 0.0.40
codegen_flags: <defaults>
</compile_context>

<pallas_src>
import jax
import jax.numpy as jnp
from jax.experimental import pallas as pl
from jax.experimental.pallas import tpu as pltpu

EPS = 1e-5


def _round_up(v, m):
    return (v + m - 1) // m * m


def basic_block(x, w1, g1, b1, w2, g2, b2):
    """x: (N, Cin, H, W) f32 NCHW; w1: (Cout, Cin, 3, 3); w2: (Cout, Cout, 3, 3)."""
    N, Cin, H, W = x.shape
    Cout = w1.shape[0]
    assert Cin == Cout, "identity residual requires in_channels == out_channels"
    # TODO(synk): the optional `downsample` projection shortcut (None in this
    # config) is not implemented.

    C = Cin
    Cp = _round_up(max(C, 8), 8)              # channel (sublane) padding
    Hp, Wp = H + 2, W + 2
    R = N * Hp * Wp                           # number of padded pixel positions
    L = R - 2 * Wp - 2                        # output columns (col i <-> pixel i+Wp+1)
    Lpad = _round_up(L, 128)                  # lane-aligned output width
    Rp = _round_up(2 * Wp + 2 + Lpad, 128)    # padded-activation lane width
    K = 9 * Cp                                # folded MXU contraction depth
    inv_cnt = 1.0 / float(N * H * W)
    taps = tuple(ky * Wp + kx for ky in range(3) for kx in range(3))

    def kernel(x2_ref, xres_ref, mask_ref, w1_ref, g1_ref, b1_ref,
               w2_ref, g2_ref, b2_ref, o_ref, y1p_ref, s_ref):
        # x2_ref  : (Cp, Rp)   f32  zero-padded input, channels on sublanes
        # xres_ref: (Cp, Lpad) f32  identity residual (lane-aligned)
        # mask    : (1, Lpad)  f32  1.0 at real output pixels, else 0.0
        # w*_ref  : (Cp, 9*Cp) bf16 tap-folded conv weights
        # g*/b*   : (Cp, 1)    f32  BN affine
        # o_ref   : (Cp, Lpad) f32  output (lane-dense, unmasked full store)
        # y1p_ref : (Cp, Rp)   f32  scratch: zero-padded intermediate activation
        # s_ref   : (K, Lpad)  f32  scratch: shared im2col stack
        mask = mask_ref[...]

        def conv_bn(src_ref, w_ref, g_ref, b_ref):
            # Stage the 9 lane-shifted tap windows once (sublane-stacked
            # im2col), then contract all taps+channels in a single MXU matmul
            # with K = 9*Cp, bf16 operands, f32 accumulation.
            for tidx, t in enumerate(taps):
                s_ref[tidx * Cp:(tidx + 1) * Cp, :] = src_ref[:, t:t + Lpad]
            acc = jnp.dot(w_ref[...], s_ref[...].astype(jnp.bfloat16),
                          preferred_element_type=jnp.float32)
            # Training-mode BN over the valid (N,H,W) positions, all channels
            # batched: acc*mask computed once, E[x^2]-mean^2 variance (f32,
            # clamped), normalize folded into one fused scale/shift.
            acc_m = acc * mask
            mean = jnp.sum(acc_m, axis=1, keepdims=True) * inv_cnt
            ex2 = jnp.sum(acc_m * acc, axis=1, keepdims=True) * inv_cnt
            var = jnp.maximum(ex2 - mean * mean, 0.0)
            scale = g_ref[...] * jax.lax.rsqrt(var + EPS)
            shift = b_ref[...] - mean * scale
            return acc * scale + shift

        # ---------- conv1 -> bn1 -> relu (zeroed outside valid pixels) ------
        y1 = jnp.maximum(conv_bn(x2_ref, w1_ref, g1_ref, b1_ref), 0.0) * mask

        # zero-padded intermediate activation feeding conv2's shifted windows
        y1p_ref[...] = jnp.zeros_like(y1p_ref)
        y1p_ref[:, Wp + 1:Wp + 1 + Lpad] = y1

        # ---------- conv2 -> bn2 -> + identity residual -> relu -------------
        z = conv_bn(y1p_ref, w2_ref, g2_ref, b2_ref)
        o_ref[...] = jnp.maximum(z + xres_ref[...], 0.0)

    # -------------------- wrapper glue: layout transforms only --------------
    # TODO(synk): fold these NCHW<->(C, R) reshuffles into the kernel DMA
    # (memory_space=pl.ANY + row-band halo copies) at ResNet scale.
    xpad = jnp.pad(x.astype(jnp.float32), ((0, 0), (0, Cp - C), (1, 1), (1, 1)))
    x2 = jnp.transpose(xpad, (1, 0, 2, 3)).reshape(Cp, R)
    x2 = jnp.pad(x2, ((0, 0), (0, Rp - R)))                  # (Cp, Rp)
    xres = x2[:, Wp + 1:Wp + 1 + Lpad]                       # (Cp, Lpad)

    # Tap-folded conv weights OIHW -> (Cout_p, 9*Cp); row block order (tap, cin)
    def fold_w(w):
        wpad = jnp.pad(w.astype(jnp.float32),
                       ((0, Cp - Cout), (0, Cp - C), (0, 0), (0, 0)))
        wt = jnp.transpose(wpad, (2, 3, 1, 0)).reshape(K, Cp)   # (tap*cin, co)
        return jnp.transpose(wt, (1, 0)).astype(jnp.bfloat16)   # (co, tap*cin)

    def fold_bn(v):
        return jnp.pad(v.astype(jnp.float32), (0, Cp - Cout)).reshape(Cp, 1)

    # validity mask over the Lpad output columns (pure function of the shapes)
    i = jnp.arange(Lpad, dtype=jnp.int32)
    p = i + Wp + 1
    yy = (p % (Hp * Wp)) // Wp
    xx = p % Wp
    valid = (i < L) & (yy >= 1) & (yy <= H) & (xx >= 1) & (xx <= W)
    mask = valid.astype(jnp.float32).reshape(1, Lpad)

    flops = 2 * (2 * Cp * K * Lpad) + 30 * Cp * Lpad
    bytes_accessed = (4 * (3 * Cp * Rp + 4 * Cp * Lpad + Lpad + 4 * K * Lpad)
                      + 2 * (2 * Cp * K))

    vmem = pl.BlockSpec(memory_space=pltpu.MemorySpace.VMEM)
    out_flat = pl.pallas_call(
        kernel,
        out_shape=jax.ShapeDtypeStruct((Cp, Lpad), jnp.float32),
        in_specs=[vmem] * 9,
        out_specs=vmem,
        scratch_shapes=[pltpu.VMEM((Cp, Rp), jnp.float32),
                        pltpu.VMEM((K, Lpad), jnp.float32)],
        compiler_params=pltpu.CompilerParams(vmem_limit_bytes=32 * 1024 * 1024),
        cost_estimate=pl.CostEstimate(flops=int(flops), transcendentals=2 * Cp,
                                      bytes_accessed=int(bytes_accessed)),
    )(x2, xres, mask, fold_w(w1), fold_bn(g1), fold_bn(b1),
      fold_w(w2), fold_bn(g2), fold_bn(b2))

    # glue: scatter the lane-flat result back to NCHW (drops garbage columns)
    out_pad = jnp.pad(out_flat[:Cout, :L], ((0, 0), (Wp + 1, Wp + 1)))  # (Cout, R)
    out = out_pad.reshape(Cout, N, Hp, Wp)[:, :, 1:H + 1, 1:W + 1]
    return jnp.transpose(out, (1, 0, 2, 3)).astype(x.dtype)


def basic_block_reference(x, w1, g1, b1, w2, g2, b2):
    """Pure-JAX reference matching PyTorch BasicBlock.forward (training-mode BN)."""
    def conv(x, w):
        return jax.lax.conv_general_dilated(
            x, w, window_strides=(1, 1), padding=((1, 1), (1, 1)),
            dimension_numbers=("NCHW", "OIHW", "NCHW"),
            precision=jax.lax.Precision.HIGHEST)

    def bn(y, g, b):
        m = jnp.mean(y, axis=(0, 2, 3), keepdims=True)
        v = jnp.mean((y - m) ** 2, axis=(0, 2, 3), keepdims=True)
        return (y - m) * jax.lax.rsqrt(v + EPS) * g.reshape(1, -1, 1, 1) \
               + b.reshape(1, -1, 1, 1)

    out = jax.nn.relu(bn(conv(x, w1), g1, b1))
    out = bn(conv(out, w2), g2, b2)
    return jax.nn.relu(out + x)


if __name__ == "__main__":
    N, C, H, W = 2, 4, 16, 16          # in_channels == out_channels == 4, stride=1

    key = jax.random.PRNGKey(0)
    k = jax.random.split(key, 6)
    x  = jax.random.normal(k[0], (N, C, H, W), dtype=jnp.float32)
    w1 = jax.random.normal(k[1], (C, C, 3, 3), dtype=jnp.float32) * 0.1
    w2 = jax.random.normal(k[2], (C, C, 3, 3), dtype=jnp.float32) * 0.1
    g1 = 1.0 + 0.1 * jax.random.normal(k[3], (C,), dtype=jnp.float32)
    b1 = 0.1 * jax.random.normal(k[4], (C,), dtype=jnp.float32)
    g2 = 1.0 + 0.1 * jax.random.normal(k[5], (C,), dtype=jnp.float32)
    b2 = jnp.zeros((C,), dtype=jnp.float32)

    out = jax.block_until_ready(basic_block(x, w1, g1, b1, w2, g2, b2))
    ref = basic_block_reference(x, w1, g1, b1, w2, g2, b2)

    assert out.shape == (N, C, H, W)
    err = float(jnp.max(jnp.abs(out - ref)))
    # Tolerance: the kernel feeds the MXU bf16 operands (f32 accumulation and
    # f32 BN math) while the reference is a full-f32 HIGHEST-precision conv;
    # two BN-normalized convs amplify ~2^-8 bf16 rounding into a few 1e-2 on
    # these unit-variance outputs.  Genuine indexing/semantic bugs give O(1).
    assert err < 5e-2, f"max abs err {err}"
    print("KERNEL_OK")
</pallas_src>

<mosaic_0001>
module attributes {stable_mosaic.version = 11 : i64} {
  func.func @kernel(%arg0: memref<8x768xf32, #tpu.memory_space<vmem>>, %arg1: memref<8x640xf32, #tpu.memory_space<vmem>>, %arg2: memref<1x640xf32, #tpu.memory_space<vmem>>, %arg3: memref<8x72xbf16, #tpu.memory_space<vmem>>, %arg4: memref<8x1xf32, #tpu.memory_space<vmem>>, %arg5: memref<8x1xf32, #tpu.memory_space<vmem>>, %arg6: memref<8x72xbf16, #tpu.memory_space<vmem>>, %arg7: memref<8x1xf32, #tpu.memory_space<vmem>>, %arg8: memref<8x1xf32, #tpu.memory_space<vmem>>, %arg9: memref<8x640xf32, #tpu.memory_space<vmem>>, %arg10: memref<8x768xf32, #tpu.memory_space<vmem>>, %arg11: memref<72x640xf32, #tpu.memory_space<vmem>>) attributes {dimension_semantics = [], scalar_prefetch = 0 : i64, scratch_operands = 2 : i64, tpu.core_type = #tpu.core_type<tc>} {
    %c0 = arith.constant 0 : index
    %c0_0 = arith.constant 0 : index
    %0 = vector.load %arg2[%c0, %c0_0] : memref<1x640xf32, #tpu.memory_space<vmem>>, vector<1x640xf32>
    %c0_1 = arith.constant 0 : index
    %c0_2 = arith.constant 0 : index
    %1 = vector.load %arg0[%c0_1, %c0_2] : memref<8x768xf32, #tpu.memory_space<vmem>>, vector<8x640xf32>
    %c0_3 = arith.constant 0 : index
    %c0_4 = arith.constant 0 : index
    %2 = vector.load %arg11[%c0_3, %c0_4] : memref<72x640xf32, #tpu.memory_space<vmem>>, vector<8x640xf32>
    tpu.vector_store %arg11[%c0_3, %c0_4], %1 {strides = array<i32>} : memref<72x640xf32, #tpu.memory_space<vmem>>, vector<8x640xf32>,
    %c0_5 = arith.constant 0 : index
    %c1 = arith.constant 1 : index
    %3 = vector.load %arg0[%c0_5, %c1] : memref<8x768xf32, #tpu.memory_space<vmem>>, vector<8x640xf32>
    %c8 = arith.constant 8 : index
    %c0_6 = arith.constant 0 : index
    %4 = vector.load %arg11[%c8, %c0_6] : memref<72x640xf32, #tpu.memory_space<vmem>>, vector<8x640xf32>
    tpu.vector_store %arg11[%c8, %c0_6], %3 {strides = array<i32>} : memref<72x640xf32, #tpu.memory_space<vmem>>, vector<8x640xf32>,
    %c0_7 = arith.constant 0 : index
    %c2 = arith.constant 2 : index
    %5 = vector.load %arg0[%c0_7, %c2] : memref<8x768xf32, #tpu.memory_space<vmem>>, vector<8x640xf32>
    %c16 = arith.constant 16 : index
    %c0_8 = arith.constant 0 : index
    %6 = vector.load %arg11[%c16, %c0_8] : memref<72x640xf32, #tpu.memory_space<vmem>>, vector<8x640xf32>
    tpu.vector_store %arg11[%c16, %c0_8], %5 {strides = array<i32>} : memref<72x640xf32, #tpu.memory_space<vmem>>, vector<8x640xf32>,
    %c0_9 = arith.constant 0 : index
    %c18 = arith.constant 18 : index
    %7 = vector.load %arg0[%c0_9, %c18] : memref<8x768xf32, #tpu.memory_space<vmem>>, vector<8x640xf32>
    %c24 = arith.constant 24 : index
    %c0_10 = arith.constant 0 : index
    %8 = vector.load %arg11[%c24, %c0_10] : memref<72x640xf32, #tpu.memory_space<vmem>>, vector<8x640xf32>
    tpu.vector_store %arg11[%c24, %c0_10], %7 {strides = array<i32>} : memref<72x640xf32, #tpu.memory_space<vmem>>, vector<8x640xf32>,
    %c0_11 = arith.constant 0 : index
    %c19 = arith.constant 19 : index
    %9 = vector.load %arg0[%c0_11, %c19] : memref<8x768xf32, #tpu.memory_space<vmem>>, vector<8x640xf32>
    %c32 = arith.constant 32 : index
    %c0_12 = arith.constant 0 : index
    %10 = vector.load %arg11[%c32, %c0_12] : memref<72x640xf32, #tpu.memory_space<vmem>>, vector<8x640xf32>
    tpu.vector_store %arg11[%c32, %c0_12], %9 {strides = array<i32>} : memref<72x640xf32, #tpu.memory_space<vmem>>, vector<8x640xf32>,
    %c0_13 = arith.constant 0 : index
    %c20 = arith.constant 20 : index
    %11 = vector.load %arg0[%c0_13, %c20] : memref<8x768xf32, #tpu.memory_space<vmem>>, vector<8x640xf32>
    %c40 = arith.constant 40 : index
    %c0_14 = arith.constant 0 : index
    %12 = vector.load %arg11[%c40, %c0_14] : memref<72x640xf32, #tpu.memory_space<vmem>>, vector<8x640xf32>
    tpu.vector_store %arg11[%c40, %c0_14], %11 {strides = array<i32>} : memref<72x640xf32, #tpu.memory_space<vmem>>, vector<8x640xf32>,
    %c0_15 = arith.constant 0 : index
    %c36 = arith.constant 36 : index
    %13 = vector.load %arg0[%c0_15, %c36] : memref<8x768xf32, #tpu.memory_space<vmem>>, vector<8x640xf32>
    %c48 = arith.constant 48 : index
    %c0_16 = arith.constant 0 : index
    %14 = vector.load %arg11[%c48, %c0_16] : memref<72x640xf32, #tpu.memory_space<vmem>>, vector<8x640xf32>
    tpu.vector_store %arg11[%c48, %c0_16], %13 {strides = array<i32>} : memref<72x640xf32, #tpu.memory_space<vmem>>, vector<8x640xf32>,
    %c0_17 = arith.constant 0 : index
    %c37 = arith.constant 37 : index
    %15 = vector.load %arg0[%c0_17, %c37] : memref<8x768xf32, #tpu.memory_space<vmem>>, vector<8x640xf32>
    %c56 = arith.constant 56 : index
    %c0_18 = arith.constant 0 : index
    %16 = vector.load %arg11[%c56, %c0_18] : memref<72x640xf32, #tpu.memory_space<vmem>>, vector<8x640xf32>
    tpu.vector_store %arg11[%c56, %c0_18], %15 {strides = array<i32>} : memref<72x640xf32, #tpu.memory_space<vmem>>, vector<8x640xf32>,
    %c0_19 = arith.constant 0 : index
    %c38 = arith.constant 38 : index
    %17 = vector.load %arg0[%c0_19, %c38] : memref<8x768xf32, #tpu.memory_space<vmem>>, vector<8x640xf32>
    %c64 = arith.constant 64 : index
    %c0_20 = arith.constant 0 : index
    %18 = vector.load %arg11[%c64, %c0_20] : memref<72x640xf32, #tpu.memory_space<vmem>>, vector<8x640xf32>
    tpu.vector_store %arg11[%c64, %c0_20], %17 {strides = array<i32>} : memref<72x640xf32, #tpu.memory_space<vmem>>, vector<8x640xf32>,
    %c0_21 = arith.constant 0 : index
    %c0_22 = arith.constant 0 : index
    %19 = vector.load %arg3[%c0_21, %c0_22] : memref<8x72xbf16, #tpu.memory_space<vmem>>, vector<8x72xbf16>
    %c0_23 = arith.constant 0 : index
    %c0_24 = arith.constant 0 : index
    %20 = vector.load %arg11[%c0_23, %c0_24] : memref<72x640xf32, #tpu.memory_space<vmem>>, vector<72x640xf32>
    %21 = arith.truncf %20 : vector<72x640xf32> to vector<72x640xbf16>
    %cst = arith.constant dense<0.000000e+00> : vector<8x640xf32>
    %22 = tpu.matmul %19, %21, %cst {dimension_numbers = #tpu.dot_dimension_numbers<[1], [0], [0], [1], [0, 0, 1, 1], [], []>} : vector<8x72xbf16>, vector<72x640xbf16>, vector<8x640xf32> -> vector<8x640xf32>
    %23 = vector.broadcast %0 : vector<1x640xf32> to vector<8x640xf32>
    %24 = arith.mulf %22, %23 : vector<8x640xf32>
    %cst_25 = arith.constant dense<0.000000e+00> : vector<8xf32>
    %25 = vector.multi_reduction <add>, %24, %cst_25 [1] : vector<8x640xf32> to vector<8xf32>
    %26 = vector.shape_cast %25 : vector<8xf32> to vector<8x1xf32>
    %cst_26 = arith.constant 0.001953125 : f32
    %27 = vector.broadcast %cst_26 : f32 to vector<8x1xf32>
    %28 = arith.mulf %26, %27 : vector<8x1xf32>
    %29 = arith.mulf %24, %22 : vector<8x640xf32>
    %cst_27 = arith.constant dense<0.000000e+00> : vector<8xf32>
    %30 = vector.multi_reduction <add>, %29, %cst_27 [1] : vector<8x640xf32> to vector<8xf32>
    %31 = vector.shape_cast %30 : vector<8xf32> to vector<8x1xf32>
    %cst_28 = arith.constant 0.001953125 : f32
    %32 = vector.broadcast %cst_28 : f32 to vector<8x1xf32>
    %33 = arith.mulf %31, %32 : vector<8x1xf32>
    %34 = arith.mulf %28, %28 : vector<8x1xf32>
    %35 = arith.subf %33, %34 : vector<8x1xf32>
    %cst_29 = arith.constant 0.000000e+00 : f32
    %36 = vector.broadcast %cst_29 : f32 to vector<8x1xf32>
    %37 = arith.maximumf %35, %36 : vector<8x1xf32>
    %c0_30 = arith.constant 0 : index
    %c0_31 = arith.constant 0 : index
    %38 = vector.load %arg4[%c0_30, %c0_31] : memref<8x1xf32, #tpu.memory_space<vmem>>, vector<8x1xf32>
    %cst_32 = arith.constant 9.99999974E-6 : f32
    %39 = vector.broadcast %cst_32 : f32 to vector<8x1xf32>
    %40 = arith.addf %37, %39 : vector<8x1xf32>
    %41 = math.rsqrt %40 : vector<8x1xf32>
    %42 = arith.mulf %38, %41 : vector<8x1xf32>
    %c0_33 = arith.constant 0 : index
    %c0_34 = arith.constant 0 : index
    %43 = vector.load %arg5[%c0_33, %c0_34] : memref<8x1xf32, #tpu.memory_space<vmem>>, vector<8x1xf32>
    %44 = arith.mulf %28, %42 : vector<8x1xf32>
    %45 = arith.subf %43, %44 : vector<8x1xf32>
    %46 = vector.broadcast %42 : vector<8x1xf32> to vector<8x640xf32>
    %47 = arith.mulf %22, %46 : vector<8x640xf32>
    %48 = vector.broadcast %45 : vector<8x1xf32> to vector<8x640xf32>
    %49 = arith.addf %47, %48 : vector<8x640xf32>
    %cst_35 = arith.constant 0.000000e+00 : f32
    %50 = vector.broadcast %cst_35 : f32 to vector<8x640xf32>
    %51 = arith.maximumf %49, %50 : vector<8x640xf32>
    %52 = vector.broadcast %0 : vector<1x640xf32> to vector<8x640xf32>
    %53 = arith.mulf %51, %52 : vector<8x640xf32>
    %cst_36 = arith.constant 0.000000e+00 : f32
    %54 = vector.broadcast %cst_36 : f32 to vector<8x768xf32>
    %c0_37 = arith.constant 0 : index
    %c0_38 = arith.constant 0 : index
    %55 = vector.load %arg10[%c0_37, %c0_38] : memref<8x768xf32, #tpu.memory_space<vmem>>, vector<8x768xf32>
    tpu.vector_store %arg10[%c0_37, %c0_38], %54 {strides = array<i32>} : memref<8x768xf32, #tpu.memory_space<vmem>>, vector<8x768xf32>,
    %c0_39 = arith.constant 0 : index
    %c19_40 = arith.constant 19 : index
    %56 = vector.load %arg10[%c0_39, %c19_40] : memref<8x768xf32, #tpu.memory_space<vmem>>, vector<8x640xf32>
    tpu.vector_store %arg10[%c0_39, %c19_40], %53 {strides = array<i32>} : memref<8x768xf32, #tpu.memory_space<vmem>>, vector<8x640xf32>,
    %c0_41 = arith.constant 0 : index
    %c0_42 = arith.constant 0 : index
    %57 = vector.load %arg10[%c0_41, %c0_42] : memref<8x768xf32, #tpu.memory_space<vmem>>, vector<8x640xf32>
    %c0_43 = arith.constant 0 : index
    %c0_44 = arith.constant 0 : index
    %58 = vector.load %arg11[%c0_43, %c0_44] : memref<72x640xf32, #tpu.memory_space<vmem>>, vector<8x640xf32>
    tpu.vector_store %arg11[%c0_43, %c0_44], %57 {strides = array<i32>} : memref<72x640xf32, #tpu.memory_space<vmem>>, vector<8x640xf32>,
    %c0_45 = arith.constant 0 : index
    %c1_46 = arith.constant 1 : index
    %59 = vector.load %arg10[%c0_45, %c1_46] : memref<8x768xf32, #tpu.memory_space<vmem>>, vector<8x640xf32>
    %c8_47 = arith.constant 8 : index
    %c0_48 = arith.constant 0 : index
    %60 = vector.load %arg11[%c8_47, %c0_48] : memref<72x640xf32, #tpu.memory_space<vmem>>, vector<8x640xf32>
    tpu.vector_store %arg11[%c8_47, %c0_48], %59 {strides = array<i32>} : memref<72x640xf32, #tpu.memory_space<vmem>>, vector<8x640xf32>,
    %c0_49 = arith.constant 0 : index
    %c2_50 = arith.constant 2 : index
    %61 = vector.load %arg10[%c0_49, %c2_50] : memref<8x768xf32, #tpu.memory_space<vmem>>, vector<8x640xf32>
    %c16_51 = arith.constant 16 : index
    %c0_52 = arith.constant 0 : index
    %62 = vector.load %arg11[%c16_51, %c0_52] : memref<72x640xf32, #tpu.memory_space<vmem>>, vector<8x640xf32>
    tpu.vector_store %arg11[%c16_51, %c0_52], %61 {strides = array<i32>} : memref<72x640xf32, #tpu.memory_space<vmem>>, vector<8x640xf32>,
    %c0_53 = arith.constant 0 : index
    %c18_54 = arith.constant 18 : index
    %63 = vector.load %arg10[%c0_53, %c18_54] : memref<8x768xf32, #tpu.memory_space<vmem>>, vector<8x640xf32>
    %c24_55 = arith.constant 24 : index
    %c0_56 = arith.constant 0 : index
    %64 = vector.load %arg11[%c24_55, %c0_56] : memref<72x640xf32, #tpu.memory_space<vmem>>, vector<8x640xf32>
    tpu.vector_store %arg11[%c24_55, %c0_56], %63 {strides = array<i32>} : memref<72x640xf32, #tpu.memory_space<vmem>>, vector<8x640xf32>,
    %c0_57 = arith.constant 0 : index
    %c19_58 = arith.constant 19 : index
    %65 = vector.load %arg10[%c0_57, %c19_58] : memref<8x768xf32, #tpu.memory_space<vmem>>, vector<8x640xf32>
    %c32_59 = arith.constant 32 : index
    %c0_60 = arith.constant 0 : index
    %66 = vector.load %arg11[%c32_59, %c0_60] : memref<72x640xf32, #tpu.memory_space<vmem>>, vector<8x640xf32>
    tpu.vector_store %arg11[%c32_59, %c0_60], %65 {strides = array<i32>} : memref<72x640xf32, #tpu.memory_space<vmem>>, vector<8x640xf32>,
    %c0_61 = arith.constant 0 : index
    %c20_62 = arith.constant 20 : index
    %67 = vector.load %arg10[%c0_61, %c20_62] : memref<8x768xf32, #tpu.memory_space<vmem>>, vector<8x640xf32>
    %c40_63 = arith.constant 40 : index
    %c0_64 = arith.constant 0 : index
    %68 = vector.load %arg11[%c40_63, %c0_64] : memref<72x640xf32, #tpu.memory_space<vmem>>, vector<8x640xf32>
    tpu.vector_store %arg11[%c40_63, %c0_64], %67 {strides = array<i32>} : memref<72x640xf32, #tpu.memory_space<vmem>>, vector<8x640xf32>,
    %c0_65 = arith.constant 0 : index
    %c36_66 = arith.constant 36 : index
    %69 = vector.load %arg10[%c0_65, %c36_66] : memref<8x768xf32, #tpu.memory_space<vmem>>, vector<8x640xf32>
    %c48_67 = arith.constant 48 : index
    %c0_68 = arith.constant 0 : index
    %70 = vector.load %arg11[%c48_67, %c0_68] : memref<72x640xf32, #tpu.memory_space<vmem>>, vector<8x640xf32>
    tpu.vector_store %arg11[%c48_67, %c0_68], %69 {strides = array<i32>} : memref<72x640xf32, #tpu.memory_space<vmem>>, vector<8x640xf32>,
    %c0_69 = arith.constant 0 : index
    %c37_70 = arith.constant 37 : index
    %71 = vector.load %arg10[%c0_69, %c37_70] : memref<8x768xf32, #tpu.memory_space<vmem>>, vector<8x640xf32>
    %c56_71 = arith.constant 56 : index
    %c0_72 = arith.constant 0 : index
    %72 = vector.load %arg11[%c56_71, %c0_72] : memref<72x640xf32, #tpu.memory_space<vmem>>, vector<8x640xf32>
    tpu.vector_store %arg11[%c56_71, %c0_72], %71 {strides = array<i32>} : memref<72x640xf32, #tpu.memory_space<vmem>>, vector<8x640xf32>,
    %c0_73 = arith.constant 0 : index
    %c38_74 = arith.constant 38 : index
    %73 = vector.load %arg10[%c0_73, %c38_74] : memref<8x768xf32, #tpu.memory_space<vmem>>, vector<8x640xf32>
    %c64_75 = arith.constant 64 : index
    %c0_76 = arith.constant 0 : index
    %74 = vector.load %arg11[%c64_75, %c0_76] : memref<72x640xf32, #tpu.memory_space<vmem>>, vector<8x640xf32>
    tpu.vector_store %arg11[%c64_75, %c0_76], %73 {strides = array<i32>} : memref<72x640xf32, #tpu.memory_space<vmem>>, vector<8x640xf32>,
    %c0_77 = arith.constant 0 : index
    %c0_78 = arith.constant 0 : index
    %75 = vector.load %arg6[%c0_77, %c0_78] : memref<8x72xbf16, #tpu.memory_space<vmem>>, vector<8x72xbf16>
    %c0_79 = arith.constant 0 : index
    %c0_80 = arith.constant 0 : index
    %76 = vector.load %arg11[%c0_79, %c0_80] : memref<72x640xf32, #tpu.memory_space<vmem>>, vector<72x640xf32>
    %77 = arith.truncf %76 : vector<72x640xf32> to vector<72x640xbf16>
    %cst_81 = arith.constant dense<0.000000e+00> : vector<8x640xf32>
    %78 = tpu.matmul %75, %77, %cst_81 {dimension_numbers = #tpu.dot_dimension_numbers<[1], [0], [0], [1], [0, 0, 1, 1], [], []>} : vector<8x72xbf16>, vector<72x640xbf16>, vector<8x640xf32> -> vector<8x640xf32>
    %79 = vector.broadcast %0 : vector<1x640xf32> to vector<8x640xf32>
    %80 = arith.mulf %78, %79 : vector<8x640xf32>
    %cst_82 = arith.constant dense<0.000000e+00> : vector<8xf32>
    %81 = vector.multi_reduction <add>, %80, %cst_82 [1] : vector<8x640xf32> to vector<8xf32>
    %82 = vector.shape_cast %81 : vector<8xf32> to vector<8x1xf32>
    %cst_83 = arith.constant 0.001953125 : f32
    %83 = vector.broadcast %cst_83 : f32 to vector<8x1xf32>
    %84 = arith.mulf %82, %83 : vector<8x1xf32>
    %85 = arith.mulf %80, %78 : vector<8x640xf32>
    %cst_84 = arith.constant dense<0.000000e+00> : vector<8xf32>
    %86 = vector.multi_reduction <add>, %85, %cst_84 [1] : vector<8x640xf32> to vector<8xf32>
    %87 = vector.shape_cast %86 : vector<8xf32> to vector<8x1xf32>
    %cst_85 = arith.constant 0.001953125 : f32
    %88 = vector.broadcast %cst_85 : f32 to vector<8x1xf32>
    %89 = arith.mulf %87, %88 : vector<8x1xf32>
    %90 = arith.mulf %84, %84 : vector<8x1xf32>
    %91 = arith.subf %89, %90 : vector<8x1xf32>
    %cst_86 = arith.constant 0.000000e+00 : f32
    %92 = vector.broadcast %cst_86 : f32 to vector<8x1xf32>
    %93 = arith.maximumf %91, %92 : vector<8x1xf32>
    %c0_87 = arith.constant 0 : index
    %c0_88 = arith.constant 0 : index
    %94 = vector.load %arg7[%c0_87, %c0_88] : memref<8x1xf32, #tpu.memory_space<vmem>>, vector<8x1xf32>
    %cst_89 = arith.constant 9.99999974E-6 : f32
    %95 = vector.broadcast %cst_89 : f32 to vector<8x1xf32>
    %96 = arith.addf %93, %95 : vector<8x1xf32>
    %97 = math.rsqrt %96 : vector<8x1xf32>
    %98 = arith.mulf %94, %97 : vector<8x1xf32>
    %c0_90 = arith.constant 0 : index
    %c0_91 = arith.constant 0 : index
    %99 = vector.load %arg8[%c0_90, %c0_91] : memref<8x1xf32, #tpu.memory_space<vmem>>, vector<8x1xf32>
    %100 = arith.mulf %84, %98 : vector<8x1xf32>
    %101 = arith.subf %99, %100 : vector<8x1xf32>
    %102 = vector.broadcast %98 : vector<8x1xf32> to vector<8x640xf32>
    %103 = arith.mulf %78, %102 : vector<8x640xf32>
    %104 = vector.broadcast %101 : vector<8x1xf32> to vector<8x640xf32>
    %105 = arith.addf %103, %104 : vector<8x640xf32>
    %c0_92 = arith.constant 0 : index
    %c0_93 = arith.constant 0 : index
    %106 = vector.load %arg1[%c0_92, %c0_93] : memref<8x640xf32, #tpu.memory_space<vmem>>, vector<8x640xf32>
    %107 = arith.addf %105, %106 : vector<8x640xf32>
    %cst_94 = arith.constant 0.000000e+00 : f32
    %108 = vector.broadcast %cst_94 : f32 to vector<8x640xf32>
    %109 = arith.maximumf %107, %108 : vector<8x640xf32>
    %c0_95 = arith.constant 0 : index
    %c0_96 = arith.constant 0 : index
    %110 = vector.load %arg9[%c0_95, %c0_96] : memref<8x640xf32, #tpu.memory_space<vmem>>, vector<8x640xf32>
    tpu.vector_store %arg9[%c0_95, %c0_96], %109 {strides = array<i32>} : memref<8x640xf32, #tpu.memory_space<vmem>>, vector<8x640xf32>,
    return
  }
}

</mosaic_0001>

<llo_original>
// kernel: tpu_custom_call.1
$region0: #{tpu_custom_call.1}
  #allocation0 [shape = 'u32[]', space=smem, size = 0x4, offset = 0x4, fixed_abs, tag = 'smem constant byte address 0x4 - core index']
  #allocation1 [shape = 'u32[144,128]{1,0:T(1,128)}', space=vmem, size = 0x12000, scoped, tag = 'internal scratch']
  #allocation2 [shape = 'f32[8,768]{1,0:T(8,128)}', space=vmem, size = 0x6000, scoped, tag = 'scratch operand']
  #allocation3 [shape = 'f32[72,640]{1,0:T(8,128)}', space=vmem, size = 0x2d000, scoped, tag = 'scratch operand']
  %s0 = inlined_call_operand.hbm [shape: f32[8,768], index: 0, kind: input, shape index: {}]
  %s1 = inlined_call_operand.hbm [shape: f32[8,640], index: 1, kind: input, shape index: {}]
  %s2 = inlined_call_operand.vmem [shape: f32[1,640], index: 2, kind: input, shape index: {}]
  %s3 = inlined_call_operand.vmem [shape: bf16[8,72], index: 3, kind: input, shape index: {}]
  %s4 = inlined_call_operand.vmem [shape: f32[8,1], index: 4, kind: input, shape index: {}]
  %s5 = inlined_call_operand.vmem [shape: f32[8,1], index: 5, kind: input, shape index: {}]
  %s6 = inlined_call_operand.vmem [shape: bf16[8,72], index: 6, kind: input, shape index: {}]
  %s7 = inlined_call_operand.vmem [shape: f32[8,1], index: 7, kind: input, shape index: {}]
  %s8 = inlined_call_operand.vmem [shape: f32[8,1], index: 8, kind: input, shape index: {}]
  %s9 = inlined_call_operand.hbm [shape: f32[8,640], index: 9, kind: output, shape index: {}]
  %s10 = sld [smem:[#allocation0]]
  $region54: #{tpu_custom_call.1} parent=0
    _
  %s12 = ssub.s32 1, %s10
  %s13 = scalar_select 0, %s12, %s10
  $region1: #{tpu_custom_call.1} parent=0
    #allocation4 [shape = 'u8[24576]{0}', space=vmem, size = 0x6000, scoped, tag = 'input window, operand 0, single buffered']
    #allocation5 [shape = 's32[1]{0}', space=sflag, size = 0x4, scoped, tag = 'scoped memory for tpu_custom_call.1']
    #allocation6 [shape = 's32[1]{0}', space=sflag, size = 0x4, scoped, tag = 'scoped memory for tpu_custom_call.1']
    #allocation7 [shape = 'u8[20480]{0}', space=vmem, size = 0x5000, scoped, tag = 'input window, operand 1, single buffered']
    #allocation8 [shape = 's32[1]{0}', space=sflag, size = 0x4, scoped, tag = 'scoped memory for tpu_custom_call.1']
    #allocation9 [shape = 'u8[20480]{0}', space=vmem, size = 0x5000, scoped, tag = 'output window, operand 0, single buffered']
    %14 = vsyncpa [#allocation5], 0
    %15 = vsyncpa [#allocation8], 0
    %16 = vsyncpa [#allocation6], 0
    // Predicated region
    $region2: #{tpu_custom_call.1} parent=1 // pred_check
      _
    $region3: #{tpu_custom_call.1} parent=1 // pred_check_branch
      %18 = sbr.rel (0) target = $region5
    $region4: #{tpu_custom_call.1} parent=1 // pred_region
      %s20 = ssub.s32 768, 768
      %21 = vsyncadd [#allocation5], %s20
      %s23 = sshll.u32 [#allocation4], 4
      %s24 = int_to_ptr.vmem [resolvable:$true] %s23
      %26 = dma.hbm_to_vmem [thread:$0]  %s0, 768, %s24, [#allocation5]
    $region5: #{tpu_custom_call.1} parent=1 // pred_fallthru
      _
    // Predicated region
    $region6: #{tpu_custom_call.1} parent=1 // pred_check
      _
    $region7: #{tpu_custom_call.1} parent=1 // pred_check_branch
      %28 = sbr.rel (0) target = $region9
    $region8: #{tpu_custom_call.1} parent=1 // pred_region
      %s30 = ssub.s32 640, 640
      %31 = vsyncadd [#allocation8], %s30
      %s33 = sshll.u32 [#allocation7], 4
      %s34 = int_to_ptr.vmem [resolvable:$true] %s33
      %36 = dma.hbm_to_vmem [thread:$0]  %s1, 640, %s34, [#allocation8]
    $region9: #{tpu_custom_call.1} parent=1 // pred_fallthru
      _
    // Predicated region
    $region10: #{tpu_custom_call.1} parent=1 // pred_check
      _
    $region11: #{tpu_custom_call.1} parent=1 // pred_check_branch
      %38 = sbr.rel (0) target = $region13
    $region12: #{tpu_custom_call.1} parent=1 // pred_region
      _
    $region13: #{tpu_custom_call.1} parent=1 // pred_fallthru
      _
    // Predicated region
    $region14: #{tpu_custom_call.1} parent=1 // pred_check
      _
    $region15: #{tpu_custom_call.1} parent=1 // pred_check_branch
      %40 = sbr.rel (0) target = $region17
    $region16: #{tpu_custom_call.1} parent=1 // pred_region
      _
    $region17: #{tpu_custom_call.1} parent=1 // pred_fallthru
      _
    // Predicated region
    $region18: #{tpu_custom_call.1} parent=1 // pred_check
      _
    $region19: #{tpu_custom_call.1} parent=1 // pred_check_branch
      %42 = sbr.rel (0) target = $region21
    $region20: #{tpu_custom_call.1} parent=1 // pred_region
      _
    $region21: #{tpu_custom_call.1} parent=1 // pred_fallthru
      _
    // Predicated region
    $region22: #{tpu_custom_call.1} parent=1 // pred_check
      _
    $region23: #{tpu_custom_call.1} parent=1 // pred_check_branch
      %44 = sbr.rel (0) target = $region25
    $region24: #{tpu_custom_call.1} parent=1 // pred_region
      _
    $region25: #{tpu_custom_call.1} parent=1 // pred_fallthru
      _
    // Predicated region
    $region26: #{tpu_custom_call.1} parent=1 // pred_check
      _
    $region27: #{tpu_custom_call.1} parent=1 // pred_check_branch
      %46 = sbr.rel (0) target = $region29
    $region28: #{tpu_custom_call.1} parent=1 // pred_region
      _
    $region29: #{tpu_custom_call.1} parent=1 // pred_fallthru
      _
    // Predicated region
    $region30: #{tpu_custom_call.1} parent=1 // pred_check
      _
    $region31: #{tpu_custom_call.1} parent=1 // pred_check_branch
      %48 = sbr.rel (0) target = $region33
    $region32: #{tpu_custom_call.1} parent=1 // pred_region
      _
    $region33: #{tpu_custom_call.1} parent=1 // pred_fallthru
      _
    // Predicated region
    $region34: #{tpu_custom_call.1} parent=1 // pred_check
      _
    $region35: #{tpu_custom_call.1} parent=1 // pred_check_branch
      %50 = sbr.rel (0) target = $region37
    $region36: #{tpu_custom_call.1} parent=1 // pred_region
      _
    $region37: #{tpu_custom_call.1} parent=1 // pred_fallthru
      _
    // Predicated region
    $region38: #{tpu_custom_call.1} parent=1 // pred_check
      _
    $region39: #{tpu_custom_call.1} parent=1 // pred_check_branch
      %52 = sbr.rel (0) target = $region41
    $region40: #{tpu_custom_call.1} parent=1 // pred_region
      %53 = dma.done [#allocation5], 768
    $region41: #{tpu_custom_call.1} parent=1 // pred_fallthru
      _
    // Predicated region
    $region42: #{tpu_custom_call.1} parent=1 // pred_check
      _
    $region43: #{tpu_custom_call.1} parent=1 // pred_check_branch
      %55 = sbr.rel (0) target = $region45
    $region44: #{tpu_custom_call.1} parent=1 // pred_region
      %56 = dma.done [#allocation8], 640
    $region45: #{tpu_custom_call.1} parent=1 // pred_fallthru
      _
    %v58 = vld [vmem:[%s2] sm:$0x1f]
    %v59 = vld [vmem:[#allocation4] sm:$0xff]
    %v60 = vld [vmem:[#allocation4 + $0x8] sm:$0xff]
    %v61 = vld [vmem:[#allocation4 + $0x10] sm:$0xff]
    %v62 = vld [vmem:[#allocation4 + $0x18] sm:$0xff]
    %v63 = vld [vmem:[#allocation4 + $0x20] sm:$0xff]
    %64 = vst [vmem:[#allocation3] sm:$0xff] %v59
    %65 = vst [vmem:[#allocation3 + $0x8] sm:$0xff] %v60
    %66 = vst [vmem:[#allocation3 + $0x10] sm:$0xff] %v61
    %67 = vst [vmem:[#allocation3 + $0x18] sm:$0xff] %v62
    %68 = vst [vmem:[#allocation3 + $0x20] sm:$0xff] %v63
    %v69 = vld [vmem:[#allocation4] sm:$0xff]
    %v70 = vld [vmem:[#allocation4 + $0x8] sm:$0xff]
    %v71 = vld [vmem:[#allocation4 + $0x10] sm:$0xff]
    %v72 = vld [vmem:[#allocation4 + $0x18] sm:$0xff]
    %v73 = vld [vmem:[#allocation4 + $0x20] sm:$0xff]
    %v74 = vld [vmem:[#allocation4 + $0x28] sm:$0xff]
    %81 = vrot.lane.b32.xlu0 %v69, 127
    %v82 = vpop.permute.xlu0 %81
    %83 = vrot.lane.b32.xlu0 %v70, 127
    %v84 = vpop.permute.xlu0 %83
    %85 = vrot.lane.b32.xlu0 %v71, 127
    %v86 = vpop.permute.xlu0 %85
    %87 = vrot.lane.b32.xlu0 %v72, 127
    %v88 = vpop.permute.xlu0 %87
    %89 = vrot.lane.b32.xlu0 %v73, 127
    %v90 = vpop.permute.xlu0 %89
    %91 = vrot.lane.b32.xlu0 %v74, 127
    %v92 = vpop.permute.xlu0 %91
    %vm93 = vcmask 1039360
    %v94 = vsel %vm93, %v82, %v84
    %v95 = vsel %vm93, %v84, %v86
    %v96 = vsel %vm93, %v86, %v88
    %v97 = vsel %vm93, %v88, %v90
    %v98 = vsel %vm93, %v90, %v92
    %104 = vst [vmem:[#allocation3 + $0x28] sm:$0xff] %v94
    %105 = vst [vmem:[#allocation3 + $0x30] sm:$0xff] %v95
    %106 = vst [vmem:[#allocation3 + $0x38] sm:$0xff] %v96
    %107 = vst [vmem:[#allocation3 + $0x40] sm:$0xff] %v97
    %108 = vst [vmem:[#allocation3 + $0x48] sm:$0xff] %v98
    %v109 = vld [vmem:[#allocation4] sm:$0xff]
    %v110 = vld [vmem:[#allocation4 + $0x8] sm:$0xff]
    %v111 = vld [vmem:[#allocation4 + $0x10] sm:$0xff]
    %v112 = vld [vmem:[#allocation4 + $0x18] sm:$0xff]
    %v113 = vld [vmem:[#allocation4 + $0x20] sm:$0xff]
    %v114 = vld [vmem:[#allocation4 + $0x28] sm:$0xff]
    %121 = vrot.lane.b32.xlu0 %v109, 126
    %v122 = vpop.permute.xlu0 %121
    %123 = vrot.lane.b32.xlu0 %v110, 126
    %v124 = vpop.permute.xlu0 %123
    %125 = vrot.lane.b32.xlu0 %v111, 126
    %v126 = vpop.permute.xlu0 %125
    %127 = vrot.lane.b32.xlu0 %v112, 126
    %v128 = vpop.permute.xlu0 %127
    %129 = vrot.lane.b32.xlu0 %v113, 126
    %v130 = vpop.permute.xlu0 %129
    %131 = vrot.lane.b32.xlu0 %v114, 126
    %v132 = vpop.permute.xlu0 %131
    %vm133 = vcmask 1031168
    %v134 = vsel %vm133, %v122, %v124
    %v135 = vsel %vm133, %v124, %v126
    %v136 = vsel %vm133, %v126, %v128
    %v137 = vsel %vm133, %v128, %v130
    %v138 = vsel %vm133, %v130, %v132
    %144 = vst [vmem:[#allocation3 + $0x50] sm:$0xff] %v134
    %145 = vst [vmem:[#allocation3 + $0x58] sm:$0xff] %v135
    %146 = vst [vmem:[#allocation3 + $0x60] sm:$0xff] %v136
    %147 = vst [vmem:[#allocation3 + $0x68] sm:$0xff] %v137
    %148 = vst [vmem:[#allocation3 + $0x70] sm:$0xff] %v138
    %v149 = vld [vmem:[#allocation4] sm:$0xff]
    %v150 = vld [vmem:[#allocation4 + $0x8] sm:$0xff]
    %v151 = vld [vmem:[#allocation4 + $0x10] sm:$0xff]
    %v152 = vld [vmem:[#allocation4 + $0x18] sm:$0xff]
    %v153 = vld [vmem:[#allocation4 + $0x20] sm:$0xff]
    %v154 = vld [vmem:[#allocation4 + $0x28] sm:$0xff]
    %161 = vrot.lane.b32.xlu0 %v149, 110
    %v162 = vpop.permute.xlu0 %161
    %163 = vrot.lane.b32.xlu0 %v150, 110
    %v164 = vpop.permute.xlu0 %163
    %165 = vrot.lane.b32.xlu0 %v151, 110
    %v166 = vpop.permute.xlu0 %165
    %167 = vrot.lane.b32.xlu0 %v152, 110
    %v168 = vpop.permute.xlu0 %167
    %169 = vrot.lane.b32.xlu0 %v153, 110
    %v170 = vpop.permute.xlu0 %169
    %171 = vrot.lane.b32.xlu0 %v154, 110
    %v172 = vpop.permute.xlu0 %171
    %vm173 = vcmask 900096
    %v174 = vsel %vm173, %v162, %v164
    %v175 = vsel %vm173, %v164, %v166
    %v176 = vsel %vm173, %v166, %v168
    %v177 = vsel %vm173, %v168, %v170
    %v178 = vsel %vm173, %v170, %v172
    %184 = vst [vmem:[#allocation3 + $0x78] sm:$0xff] %v174
    %185 = vst [vmem:[#allocation3 + $0x80] sm:$0xff] %v175
    %186 = vst [vmem:[#allocation3 + $0x88] sm:$0xff] %v176
    %187 = vst [vmem:[#allocation3 + $0x90] sm:$0xff] %v177
    %188 = vst [vmem:[#allocation3 + $0x98] sm:$0xff] %v178
    %v189 = vld [vmem:[#allocation4] sm:$0xff]
    %v190 = vld [vmem:[#allocation4 + $0x8] sm:$0xff]
    %v191 = vld [vmem:[#allocation4 + $0x10] sm:$0xff]
    %v192 = vld [vmem:[#allocation4 + $0x18] sm:$0xff]
    %v193 = vld [vmem:[#allocation4 + $0x20] sm:$0xff]
    %v194 = vld [vmem:[#allocation4 + $0x28] sm:$0xff]
    %201 = vrot.lane.b32.xlu0 %v189, 109
    %v202 = vpop.permute.xlu0 %201
    %203 = vrot.lane.b32.xlu0 %v190, 109
    %v204 = vpop.permute.xlu0 %203
    %205 = vrot.lane.b32.xlu0 %v191, 109
    %v206 = vpop.permute.xlu0 %205
    %207 = vrot.lane.b32.xlu0 %v192, 109
    %v208 = vpop.permute.xlu0 %207
    %209 = vrot.lane.b32.xlu0 %v193, 109
    %v210 = vpop.permute.xlu0 %209
    %211 = vrot.lane.b32.xlu0 %v194, 109
    %v212 = vpop.permute.xlu0 %211
    %vm213 = vcmask 891904
    %v214 = vsel %vm213, %v202, %v204
    %v215 = vsel %vm213, %v204, %v206
    %v216 = vsel %vm213, %v206, %v208
    %v217 = vsel %vm213, %v208, %v210
    %v218 = vsel %vm213, %v210, %v212
    %224 = vst [vmem:[#allocation3 + $0xa0] sm:$0xff] %v214
    %225 = vst [vmem:[#allocation3 + $0xa8] sm:$0xff] %v215
    %226 = vst [vmem:[#allocation3 + $0xb0] sm:$0xff] %v216
    %227 = vst [vmem:[#allocation3 + $0xb8] sm:$0xff] %v217
    %228 = vst [vmem:[#allocation3 + $0xc0] sm:$0xff] %v218
    %v229 = vld [vmem:[#allocation4] sm:$0xff]
    %v230 = vld [vmem:[#allocation4 + $0x8] sm:$0xff]
    %v231 = vld [vmem:[#allocation4 + $0x10] sm:$0xff]
    %v232 = vld [vmem:[#allocation4 + $0x18] sm:$0xff]
    %v233 = vld [vmem:[#allocation4 + $0x20] sm:$0xff]
    %v234 = vld [vmem:[#allocation4 + $0x28] sm:$0xff]
    %241 = vrot.lane.b32.xlu0 %v229, 108
    %v242 = vpop.permute.xlu0 %241
    %243 = vrot.lane.b32.xlu0 %v230, 108
    %v244 = vpop.permute.xlu0 %243
    %245 = vrot.lane.b32.xlu0 %v231, 108
    %v246 = vpop.permute.xlu0 %245
    %247 = vrot.lane.b32.xlu0 %v232, 108
    %v248 = vpop.permute.xlu0 %247
    %249 = vrot.lane.b32.xlu0 %v233, 108
    %v250 = vpop.permute.xlu0 %249
    %251 = vrot.lane.b32.xlu0 %v234, 108
    %v252 = vpop.permute.xlu0 %251
    %vm253 = vcmask 883712
    %v254 = vsel %vm253, %v242, %v244
    %v255 = vsel %vm253, %v244, %v246
    %v256 = vsel %vm253, %v246, %v248
    %v257 = vsel %vm253, %v248, %v250
    %v258 = vsel %vm253, %v250, %v252
    %264 = vst [vmem:[#allocation3 + $0xc8] sm:$0xff] %v254
    %265 = vst [vmem:[#allocation3 + $0xd0] sm:$0xff] %v255
    %266 = vst [vmem:[#allocation3 + $0xd8] sm:$0xff] %v256
    %267 = vst [vmem:[#allocation3 + $0xe0] sm:$0xff] %v257
    %268 = vst [vmem:[#allocation3 + $0xe8] sm:$0xff] %v258
    %v269 = vld [vmem:[#allocation4] sm:$0xff]
    %v270 = vld [vmem:[#allocation4 + $0x8] sm:$0xff]
    %v271 = vld [vmem:[#allocation4 + $0x10] sm:$0xff]
    %v272 = vld [vmem:[#allocation4 + $0x18] sm:$0xff]
    %v273 = vld [vmem:[#allocation4 + $0x20] sm:$0xff]
    %v274 = vld [vmem:[#allocation4 + $0x28] sm:$0xff]
    %281 = vrot.lane.b32.xlu0 %v269, 92
    %v282 = vpop.permute.xlu0 %281
    %283 = vrot.lane.b32.xlu0 %v270, 92
    %v284 = vpop.permute.xlu0 %283
    %285 = vrot.lane.b32.xlu0 %v271, 92
    %v286 = vpop.permute.xlu0 %285
    %287 = vrot.lane.b32.xlu0 %v272, 92
    %v288 = vpop.permute.xlu0 %287
    %289 = vrot.lane.b32.xlu0 %v273, 92
    %v290 = vpop.permute.xlu0 %289
    %291 = vrot.lane.b32.xlu0 %v274, 92
    %v292 = vpop.permute.xlu0 %291
    %vm293 = vcmask 752640
    %v294 = vsel %vm293, %v282, %v284
    %v295 = vsel %vm293, %v284, %v286
    %v296 = vsel %vm293, %v286, %v288
    %v297 = vsel %vm293, %v288, %v290
    %v298 = vsel %vm293, %v290, %v292
    %304 = vst [vmem:[#allocation3 + $0xf0] sm:$0xff] %v294
    %305 = vst [vmem:[#allocation3 + $0xf8] sm:$0xff] %v295
    %306 = vst [vmem:[#allocation3 + $0x100] sm:$0xff] %v296
    %307 = vst [vmem:[#allocation3 + $0x108] sm:$0xff] %v297
    %308 = vst [vmem:[#allocation3 + $0x110] sm:$0xff] %v298
    %v309 = vld [vmem:[#allocation4] sm:$0xff]
    %v310 = vld [vmem:[#allocation4 + $0x8] sm:$0xff]
    %v311 = vld [vmem:[#allocation4 + $0x10] sm:$0xff]
    %v312 = vld [vmem:[#allocation4 + $0x18] sm:$0xff]
    %v313 = vld [vmem:[#allocation4 + $0x20] sm:$0xff]
    %v314 = vld [vmem:[#allocation4 + $0x28] sm:$0xff]
    %321 = vrot.lane.b32.xlu0 %v309, 91
    %v322 = vpop.permute.xlu0 %321
    %323 = vrot.lane.b32.xlu0 %v310, 91
    %v324 = vpop.permute.xlu0 %323
    %325 = vrot.lane.b32.xlu0 %v311, 91
    %v326 = vpop.permute.xlu0 %325
    %327 = vrot.lane.b32.xlu0 %v312, 91
    %v328 = vpop.permute.xlu0 %327
    %329 = vrot.lane.b32.xlu0 %v313, 91
    %v330 = vpop.permute.xlu0 %329
    %331 = vrot.lane.b32.xlu0 %v314, 91
    %v332 = vpop.permute.xlu0 %331
    %vm333 = vcmask 744448
    %v334 = vsel %vm333, %v322, %v324
    %v335 = vsel %vm333, %v324, %v326
    %v336 = vsel %vm333, %v326, %v328
    %v337 = vsel %vm333, %v328, %v330
    %v338 = vsel %vm333, %v330, %v332
    %344 = vst [vmem:[#allocation3 + $0x118] sm:$0xff] %v334
    %345 = vst [vmem:[#allocation3 + $0x120] sm:$0xff] %v335
    %346 = vst [vmem:[#allocation3 + $0x128] sm:$0xff] %v336
    %347 = vst [vmem:[#allocation3 + $0x130] sm:$0xff] %v337
    %348 = vst [vmem:[#allocation3 + $0x138] sm:$0xff] %v338
    %v349 = vld [vmem:[#allocation4] sm:$0xff]
    %v350 = vld [vmem:[#allocation4 + $0x8] sm:$0xff]
    %v351 = vld [vmem:[#allocation4 + $0x10] sm:$0xff]
    %v352 = vld [vmem:[#allocation4 + $0x18] sm:$0xff]
    %v353 = vld [vmem:[#allocation4 + $0x20] sm:$0xff]
    %v354 = vld [vmem:[#allocation4 + $0x28] sm:$0xff]
    %361 = vrot.lane.b32.xlu0 %v349, 90
    %v362 = vpop.permute.xlu0 %361
    %363 = vrot.lane.b32.xlu0 %v350, 90
    %v364 = vpop.permute.xlu0 %363
    %365 = vrot.lane.b32.xlu0 %v351, 90
    %v366 = vpop.permute.xlu0 %365
    %367 = vrot.lane.b32.xlu0 %v352, 90
    %v368 = vpop.permute.xlu0 %367
    %369 = vrot.lane.b32.xlu0 %v353, 90
    %v370 = vpop.permute.xlu0 %369
    %371 = vrot.lane.b32.xlu0 %v354, 90
    %v372 = vpop.permute.xlu0 %371
    %vm373 = vcmask 736256
    %v374 = vsel %vm373, %v362, %v364
    %v375 = vsel %vm373, %v364, %v366
    %v376 = vsel %vm373, %v366, %v368
    %v377 = vsel %vm373, %v368, %v370
    %v378 = vsel %vm373, %v370, %v372
    %384 = vst [vmem:[#allocation3 + $0x140] sm:$0xff] %v374
    %385 = vst [vmem:[#allocation3 + $0x148] sm:$0xff] %v375
    %386 = vst [vmem:[#allocation3 + $0x150] sm:$0xff] %v376
    %387 = vst [vmem:[#allocation3 + $0x158] sm:$0xff] %v377
    %388 = vst [vmem:[#allocation3 + $0x160] sm:$0xff] %v378
    %v389 = vld [vmem:[%s3] sm:$0xf]
    %v390 = vld [vmem:[#allocation3] sm:$0xff]
    %v391 = vld [vmem:[#allocation3 + $0x8] sm:$0xff]
    %v392 = vld [vmem:[#allocation3 + $0x10] sm:$0xff]
    %v393 = vld [vmem:[#allocation3 + $0x18] sm:$0xff]
    %v394 = vld [vmem:[#allocation3 + $0x20] sm:$0xff]
    %v395 = vld [vmem:[#allocation3 + $0x28] sm:$0xff]
    %v396 = vld [vmem:[#allocation3 + $0x30] sm:$0xff]
    %v397 = vld [vmem:[#allocation3 + $0x38] sm:$0xff]
    %v398 = vld [vmem:[#allocation3 + $0x40] sm:$0xff]
    %v399 = vld [vmem:[#allocation3 + $0x48] sm:$0xff]
    %v400 = vld [vmem:[#allocation3 + $0x50] sm:$0xff]
    %v401 = vld [vmem:[#allocation3 + $0x58] sm:$0xff]
    %v402 = vld [vmem:[#allocation3 + $0x60] sm:$0xff]
    %v403 = vld [vmem:[#allocation3 + $0x68] sm:$0xff]
    %v404 = vld [vmem:[#allocation3 + $0x70] sm:$0xff]
    %v405 = vld [vmem:[#allocation3 + $0x78] sm:$0xff]
    %v406 = vld [vmem:[#allocation3 + $0x80] sm:$0xff]
    %v407 = vld [vmem:[#allocation3 + $0x88] sm:$0xff]
    %v408 = vld [vmem:[#allocation3 + $0x90] sm:$0xff]
    %v409 = vld [vmem:[#allocation3 + $0x98] sm:$0xff]
    %v410 = vld [vmem:[#allocation3 + $0xa0] sm:$0xff]
    %v411 = vld [vmem:[#allocation3 + $0xa8] sm:$0xff]
    %v412 = vld [vmem:[#allocation3 + $0xb0] sm:$0xff]
    %v413 = vld [vmem:[#allocation3 + $0xb8] sm:$0xff]
    %v414 = vld [vmem:[#allocation3 + $0xc0] sm:$0xff]
    %v415 = vld [vmem:[#allocation3 + $0xc8] sm:$0xff]
    %v416 = vld [vmem:[#allocation3 + $0xd0] sm:$0xff]
    %v417 = vld [vmem:[#allocation3 + $0xd8] sm:$0xff]
    %v418 = vld [vmem:[#allocation3 + $0xe0] sm:$0xff]
    %v419 = vld [vmem:[#allocation3 + $0xe8] sm:$0xff]
    %v420 = vld [vmem:[#allocation3 + $0xf0] sm:$0xff]
    %v421 = vld [vmem:[#allocation3 + $0xf8] sm:$0xff]
    %v422 = vld [vmem:[#allocation3 + $0x100] sm:$0xff]
    %v423 = vld [vmem:[#allocation3 + $0x108] sm:$0xff]
    %v424 = vld [vmem:[#allocation3 + $0x110] sm:$0xff]
    %v425 = vld [vmem:[#allocation3 + $0x118] sm:$0xff]
    %v426 = vld [vmem:[#allocation3 + $0x120] sm:$0xff]
    %v427 = vld [vmem:[#allocation3 + $0x128] sm:$0xff]
    %v428 = vld [vmem:[#allocation3 + $0x130] sm:$0xff]
    %v429 = vld [vmem:[#allocation3 + $0x138] sm:$0xff]
    %v430 = vld [vmem:[#allocation3 + $0x140] sm:$0xff]
    %v431 = vld [vmem:[#allocation3 + $0x148] sm:$0xff]
    %v432 = vld [vmem:[#allocation3 + $0x150] sm:$0xff]
    %v433 = vld [vmem:[#allocation3 + $0x158] sm:$0xff]
    %v434 = vld [vmem:[#allocation3 + $0x160] sm:$0xff]
    %v435 = vpack.c.bf16 %v395, %v390
    %v436 = vpack.c.bf16 %v396, %v391
    %v437 = vpack.c.bf16 %v397, %v392
    %v438 = vpack.c.bf16 %v398, %v393
    %v439 = vpack.c.bf16 %v399, %v394
    %v440 = vpack.c.bf16 %v405, %v400
    %v441 = vpack.c.bf16 %v406, %v401
    %v442 = vpack.c.bf16 %v407, %v402
    %v443 = vpack.c.bf16 %v408, %v403
    %v444 = vpack.c.bf16 %v409, %v404
    %v445 = vpack.c.bf16 %v415, %v410
    %v446 = vpack.c.bf16 %v416, %v411
    %v447 = vpack.c.bf16 %v417, %v412
    %v448 = vpack.c.bf16 %v418, %v413
    %v449 = vpack.c.bf16 %v419, %v414
    %v450 = vpack.c.bf16 %v425, %v420
    %v451 = vpack.c.bf16 %v426, %v421
    %v452 = vpack.c.bf16 %v427, %v422
    %v453 = vpack.c.bf16 %v428, %v423
    %v454 = vpack.c.bf16 %v429, %v424
    %v455 = vpack.c.bf16 %v430, %v430
    %v456 = vpack.c.bf16 %v431, %v431
    %v457 = vpack.c.bf16 %v432, %v432
    %v458 = vpack.c.bf16 %v433, %v433
    %v459 = vpack.c.bf16 %v434, %v434
    %vm460 = vcmask 588800
    %v462 = vsel %vm460, %v389, 0
    %vm464 = vcmask 1043456
    %v466 = vsel %vm464, %v455, 0
    %v469 = vsel %vm464, %v456, 0
    %v472 = vsel %vm464, %v457, 0
    %v475 = vsel %vm464, %v458, 0
    %v478 = vsel %vm464, %v459, 0
    %480 = vmatprep.subr.bf16.mxu0 %v436
    %481 = vmatpush1.bf16.msra.mxu0 %v435
    %482 = vmatprep.subr.bf16.mxu0 %v441
    %483 = vmatpush1.bf16.msra.mxu0 %v440
    %484 = vmatprep.subr.bf16.mxu0 %v446
    %485 = vmatpush1.bf16.msra.mxu0 %v445
    %486 = vmatprep.subr.bf16.mxu0 %v451
    %487 = vmatpush1.bf16.msra.mxu0 %v450
    %488 = vmatprep.subr.bf16.mxu0 %v469
    %489 = vmatpush1.bf16.msra.mxu0 %v466
    %490 = vmatprep.subr.bf16.mxu0 0
    %491 = vmatpush1.bf16.msra.mxu0 0
    %492 = vmatprep.subr.bf16.mxu0 0
    %493 = vmatpush1.bf16.msra.mxu0 0
    %494 = vmatprep.subr.bf16.mxu0 0
    %495 = vmatpush1.bf16.msra.mxu0 0
    %496 = vmatprep.subr.bf16.mxu0 0
    %497 = vmatpush1.bf16.msra.mxu0 0
    %498 = vmatprep.subr.bf16.mxu0 0
    %499 = vmatpush1.bf16.msra.mxu0 0
    %500 = vmatprep.subr.bf16.mxu0 0
    %501 = vmatpush1.bf16.msra.mxu0 0
    %502 = vmatprep.subr.bf16.mxu0 0
    %503 = vmatpush1.bf16.msra.mxu0 0
    %504 = vmatprep.subr.bf16.mxu0 0
    %505 = vmatpush1.bf16.msra.mxu0 0
    %506 = vmatprep.subr.bf16.mxu0 0
    %507 = vmatpush1.bf16.msra.mxu0 0
    %508 = vmatprep.subr.bf16.mxu0 0
    %509 = vmatpush1.bf16.msra.mxu0 0
    %510 = vmatprep.subr.bf16.mxu0 0
    %511 = vmatpush1.bf16.msra.mxu0 0
    %512 = vmatprep.mubr.bf16.mxu0 0
    %513 = vmatmul.mubr.bf16.gmra.mrb[0].mxu0 %v462
    %v514 = vpop.f32.mrb[0].mxu0
    %v515 = vadd.f32 0.0, %v514
    %v516 = vpop.f32.mrb[0].mxu0
    %v517 = vadd.f32 0.0, %v516
    %v518 = vpop.f32.mrb[0].mxu0
    %v519 = vpop.f32.mrb[0].mxu0
    %520 = vdwg.mxu0
    %521 = vmatprep.subr.bf16.mxu0 %v438
    %522 = vmatpush1.bf16.msra.mxu0 %v437
    %523 = vmatprep.subr.bf16.mxu0 %v443
    %524 = vmatpush1.bf16.msra.mxu0 %v442
    %525 = vmatprep.subr.bf16.mxu0 %v448
    %526 = vmatpush1.bf16.msra.mxu0 %v447
    %527 = vmatprep.subr.bf16.mxu0 %v453
    %528 = vmatpush1.bf16.msra.mxu0 %v452
    %529 = vmatprep.subr.bf16.mxu0 %v475
    %530 = vmatpush1.bf16.msra.mxu0 %v472
    %531 = vmatprep.subr.bf16.mxu0 0
    %532 = vmatpush1.bf16.msra.mxu0 0
    %533 = vmatprep.subr.bf16.mxu0 0
    %534 = vmatpush1.bf16.msra.mxu0 0
    %535 = vmatprep.subr.bf16.mxu0 0
    %536 = vmatpush1.bf16.msra.mxu0 0
    %537 = vmatprep.subr.bf16.mxu0 0
    %538 = vmatpush1.bf16.msra.mxu0 0
    %539 = vmatprep.subr.bf16.mxu0 0
    %540 = vmatpush1.bf16.msra.mxu0 0
    %541 = vmatprep.subr.bf16.mxu0 0
    %542 = vmatpush1.bf16.msra.mxu0 0
    %543 = vmatprep.subr.bf16.mxu0 0
    %544 = vmatpush1.bf16.msra.mxu0 0
    %545 = vmatprep.subr.bf16.mxu0 0
    %546 = vmatpush1.bf16.msra.mxu0 0
    %547 = vmatprep.subr.bf16.mxu0 0
    %548 = vmatpush1.bf16.msra.mxu0 0
    %549 = vmatprep.subr.bf16.mxu0 0
    %550 = vmatpush1.bf16.msra.mxu0 0
    %551 = vmatprep.subr.bf16.mxu0 0
    %552 = vmatpush1.bf16.msra.mxu0 0
    %553 = vmatprep.mubr.bf16.mxu0 0
    %554 = vmatmul.mubr.bf16.gmra.mrb[0].mxu0 %v462
    %v555 = vpop.f32.mrb[0].mxu0
    %v556 = vadd.f32 0.0, %v555
    %v557 = vpop.f32.mrb[0].mxu0
    %v558 = vadd.f32 0.0, %v557
    %v559 = vpop.f32.mrb[0].mxu0
    %v560 = vpop.f32.mrb[0].mxu0
    %561 = vdwg.mxu0
    %562 = vmatprep.subr.bf16.mxu0 0
    %563 = vmatpush1.bf16.msra.mxu0 %v439
    %564 = vmatprep.subr.bf16.mxu0 0
    %565 = vmatpush1.bf16.msra.mxu0 %v444
    %566 = vmatprep.subr.bf16.mxu0 0
    %567 = vmatpush1.bf16.msra.mxu0 %v449
    %568 = vmatprep.subr.bf16.mxu0 0
    %569 = vmatpush1.bf16.msra.mxu0 %v454
    %570 = vmatprep.subr.bf16.mxu0 0
    %571 = vmatpush1.bf16.msra.mxu0 %v478
    %572 = vmatprep.subr.bf16.mxu0 0
    %573 = vmatpush1.bf16.msra.mxu0 0
    %574 = vmatprep.subr.bf16.mxu0 0
    %575 = vmatpush1.bf16.msra.mxu0 0
    %576 = vmatprep.subr.bf16.mxu0 0
    %577 = vmatpush1.bf16.msra.mxu0 0
    %578 = vmatprep.subr.bf16.mxu0 0
    %579 = vmatpush1.bf16.msra.mxu0 0
    %580 = vmatprep.subr.bf16.mxu0 0
    %581 = vmatpush1.bf16.msra.mxu0 0
    %582 = vmatprep.subr.bf16.mxu0 0
    %583 = vmatpush1.bf16.msra.mxu0 0
    %584 = vmatprep.subr.bf16.mxu0 0
    %585 = vmatpush1.bf16.msra.mxu0 0
    %586 = vmatprep.subr.bf16.mxu0 0
    %587 = vmatpush1.bf16.msra.mxu0 0
    %588 = vmatprep.subr.bf16.mxu0 0
    %589 = vmatpush1.bf16.msra.mxu0 0
    %590 = vmatprep.subr.bf16.mxu0 0
    %591 = vmatpush1.bf16.msra.mxu0 0
    %592 = vmatprep.subr.bf16.mxu0 0
    %593 = vmatpush1.bf16.msra.mxu0 0
    %594 = vmatprep.mubr.bf16.mxu0 0
    %595 = vmatmul.mubr.bf16.gmra.mrb[0].mxu0 %v462
    %v596 = vpop.f32.mrb[0].mxu0
    %v597 = vadd.f32 0.0, %v596
    %v598 = vpop.f32.mrb[0].mxu0
    %v599 = vpop.f32.mrb[0].mxu0
    %v600 = vpop.f32.mrb[0].mxu0
    %601 = vdwg.mxu0
    %v603 = vlaneseq
    %v604 = vshrl.u32 %v603, 7
    %v605 = vsub.s32 0, %v604
    %v606 = vrot.slane %v58, %v605
    %v607 = vlaneseq
    %v608 = vshrl.u32 %v607, 7
    %v609 = vsub.s32 1, %v608
    %v610 = vrot.slane %v58, %v609
    %v611 = vlaneseq
    %v612 = vshrl.u32 %v611, 7
    %v613 = vsub.s32 2, %v612
    %v614 = vrot.slane %v58, %v613
    %v615 = vlaneseq
    %v616 = vshrl.u32 %v615, 7
    %v617 = vsub.s32 3, %v616
    %v618 = vrot.slane %v58, %v617
    %v619 = vlaneseq
    %v620 = vshrl.u32 %v619, 7
    %v621 = vsub.s32 4, %v620
    %v622 = vrot.slane %v58, %v621
    %v628 = vmul.f32 %v515, %v606
    %v629 = vmul.f32 %v517, %v610
    %v630 = vmul.f32 %v556, %v614
    %v631 = vmul.f32 %v558, %v618
    %v632 = vmul.f32 %v597, %v622
    %v633 = vadd.f32 %v628, %v629
    %v634 = vadd.f32 %v633, %v630
    %v635 = vadd.f32 %v634, %v631
    %v636 = vadd.f32 %v635, %v632
    %637 = vadd.xlane.f32.xlu0 %v636
    %v638 = vpop.xlane.xlu0 %637
    %v639 = vmul.f32 %v638, 0.001953125
    %v640 = vmul.f32 %v628, %v515
    %v641 = vmul.f32 %v629, %v517
    %v642 = vmul.f32 %v630, %v556
    %v643 = vmul.f32 %v631, %v558
    %v644 = vmul.f32 %v632, %v597
    %v645 = vadd.f32 %v640, %v641
    %v646 = vadd.f32 %v645, %v642
    %v647 = vadd.f32 %v646, %v643
    %v648 = vadd.f32 %v647, %v644
    %649 = vadd.xlane.f32.xlu0 %v648
    %v650 = vpop.xlane.xlu0 %649
    %v651 = vmul.f32 %v650, 0.001953125
    %v652 = vmul.f32 %v639, %v639
    %v653 = vsub.f32 %v651, %v652
    %v654 = vmax.f32 %v653, 0.0
    %v655 = vld [vmem:[%s4] sm:$0xff]
    %v656 = vadd.f32 %v654, 1e-05
    %v657 = vrsqrt.pop %v656
    %v658 = vmul.f32 %v655, %v657
    %v659 = vld [vmem:[%s5] sm:$0xff]
    %v660 = vmul.f32 %v639, %v658
    %v661 = vsub.f32 %v659, %v660
    %663 = vset.pattern.permute.xlu0 0
    %664 = vperm.xlu0 %663, %v658
    %v665 = vpop.permute.xlu0 %664
    %v667 = vmul.f32 %v515, %v665
    %v668 = vmul.f32 %v517, %v665
    %v669 = vmul.f32 %v556, %v665
    %v670 = vmul.f32 %v558, %v665
    %v671 = vmul.f32 %v597, %v665
    %673 = vset.pattern.permute.xlu0 0
    %674 = vperm.xlu0 %673, %v661
    %v675 = vpop.permute.xlu0 %674
    %v677 = vadd.f32 %v667, %v675
    %v678 = vadd.f32 %v668, %v675
    %v679 = vadd.f32 %v669, %v675
    %v680 = vadd.f32 %v670, %v675
    %v681 = vadd.f32 %v671, %v675
    %v682 = vmax.f32 %v677, 0.0
    %v683 = vmax.f32 %v678, 0.0
    %v684 = vmax.f32 %v679, 0.0
    %v685 = vmax.f32 %v680, 0.0
    %v686 = vmax.f32 %v681, 0.0
    %v687 = vmul.f32 %v682, %v606
    %v688 = vmul.f32 %v683, %v610
    %v689 = vmul.f32 %v684, %v614
    %v690 = vmul.f32 %v685, %v618
    %v691 = vmul.f32 %v686, %v622
    %692 = vst [vmem:[#allocation2] sm:$0xff] 0.0
    %693 = vst [vmem:[#allocation2 + $0x8] sm:$0xff] 0.0
    %694 = vst [vmem:[#allocation2 + $0x10] sm:$0xff] 0.0
    %695 = vst [vmem:[#allocation2 + $0x18] sm:$0xff] 0.0
    %696 = vst [vmem:[#allocation2 + $0x20] sm:$0xff] 0.0
    %697 = vst [vmem:[#allocation2 + $0x28] sm:$0xff] 0.0
    %703 = vrot.lane.b32.xlu0 %v687, 19
    %v704 = vpop.permute.xlu0 %703
    %705 = vrot.lane.b32.xlu0 %v688, 19
    %v706 = vpop.permute.xlu0 %705
    %707 = vrot.lane.b32.xlu0 %v689, 19
    %v708 = vpop.permute.xlu0 %707
    %709 = vrot.lane.b32.xlu0 %v690, 19
    %v710 = vpop.permute.xlu0 %709
    %711 = vrot.lane.b32.xlu0 %v691, 19
    %v712 = vpop.permute.xlu0 %711
    %vm713 = vcmask 154624
    %v714 = vsel %vm713, %v704, %v706
    %v715 = vsel %vm713, %v706, %v708
    %v716 = vsel %vm713, %v708, %v710
    %v717 = vsel %vm713, %v710, %v712
    %vm724 = vcmask 1047704
    %725 = vst.msk [vmem:[#allocation2] sm:$0xff] %vm724, %v704
    %726 = vst [vmem:[#allocation2 + $0x8] sm:$0xff] %v714
    %727 = vst [vmem:[#allocation2 + $0x10] sm:$0xff] %v715
    %728 = vst [vmem:[#allocation2 + $0x18] sm:$0xff] %v716
    %729 = vst [vmem:[#allocation2 + $0x20] sm:$0xff] %v717
    %730 = vst.msk [vmem:[#allocation2 + $0x28] sm:$0xff] %vm713, %v712
    %v731 = vld [vmem:[#allocation2] sm:$0xff]
    %v732 = vld [vmem:[#allocation2 + $0x8] sm:$0xff]
    %v733 = vld [vmem:[#allocation2 + $0x10] sm:$0xff]
    %v734 = vld [vmem:[#allocation2 + $0x18] sm:$0xff]
    %v735 = vld [vmem:[#allocation2 + $0x20] sm:$0xff]
    %736 = vst [vmem:[#allocation3] sm:$0xff] %v731
    %737 = vst [vmem:[#allocation3 + $0x8] sm:$0xff] %v732
    %738 = vst [vmem:[#allocation3 + $0x10] sm:$0xff] %v733
    %739 = vst [vmem:[#allocation3 + $0x18] sm:$0xff] %v734
    %740 = vst [vmem:[#allocation3 + $0x20] sm:$0xff] %v735
    %v741 = vld [vmem:[#allocation2] sm:$0xff]
    %v742 = vld [vmem:[#allocation2 + $0x8] sm:$0xff]
    %v743 = vld [vmem:[#allocation2 + $0x10] sm:$0xff]
    %v744 = vld [vmem:[#allocation2 + $0x18] sm:$0xff]
    %v745 = vld [vmem:[#allocation2 + $0x20] sm:$0xff]
    %v746 = vld [vmem:[#allocation2 + $0x28] sm:$0xff]
    %753 = vrot.lane.b32.xlu0 %v741, 127
    %v754 = vpop.permute.xlu0 %753
    %755 = vrot.lane.b32.xlu0 %v742, 127
    %v756 = vpop.permute.xlu0 %755
    %757 = vrot.lane.b32.xlu0 %v743, 127
    %v758 = vpop.permute.xlu0 %757
    %759 = vrot.lane.b32.xlu0 %v744, 127
    %v760 = vpop.permute.xlu0 %759
    %761 = vrot.lane.b32.xlu0 %v745, 127
    %v762 = vpop.permute.xlu0 %761
    %763 = vrot.lane.b32.xlu0 %v746, 127
    %v764 = vpop.permute.xlu0 %763
    %v765 = vsel %vm93, %v754, %v756
    %v766 = vsel %vm93, %v756, %v758
    %v767 = vsel %vm93, %v758, %v760
    %v768 = vsel %vm93, %v760, %v762
    %v769 = vsel %vm93, %v762, %v764
    %775 = vst [vmem:[#allocation3 + $0x28] sm:$0xff] %v765
    %776 = vst [vmem:[#allocation3 + $0x30] sm:$0xff] %v766
    %777 = vst [vmem:[#allocation3 + $0x38] sm:$0xff] %v767
    %778 = vst [vmem:[#allocation3 + $0x40] sm:$0xff] %v768
    %779 = vst [vmem:[#allocation3 + $0x48] sm:$0xff] %v769
    %v780 = vld [vmem:[#allocation2] sm:$0xff]
    %v781 = vld [vmem:[#allocation2 + $0x8] sm:$0xff]
    %v782 = vld [vmem:[#allocation2 + $0x10] sm:$0xff]
    %v783 = vld [vmem:[#allocation2 + $0x18] sm:$0xff]
    %v784 = vld [vmem:[#allocation2 + $0x20] sm:$0xff]
    %v785 = vld [vmem:[#allocation2 + $0x28] sm:$0xff]
    %792 = vrot.lane.b32.xlu0 %v780, 126
    %v793 = vpop.permute.xlu0 %792
    %794 = vrot.lane.b32.xlu0 %v781, 126
    %v795 = vpop.permute.xlu0 %794
    %796 = vrot.lane.b32.xlu0 %v782, 126
    %v797 = vpop.permute.xlu0 %796
    %798 = vrot.lane.b32.xlu0 %v783, 126
    %v799 = vpop.permute.xlu0 %798
    %800 = vrot.lane.b32.xlu0 %v784, 126
    %v801 = vpop.permute.xlu0 %800
    %802 = vrot.lane.b32.xlu0 %v785, 126
    %v803 = vpop.permute.xlu0 %802
    %v804 = vsel %vm133, %v793, %v795
    %v805 = vsel %vm133, %v795, %v797
    %v806 = vsel %vm133, %v797, %v799
    %v807 = vsel %vm133, %v799, %v801
    %v808 = vsel %vm133, %v801, %v803
    %814 = vst [vmem:[#allocation3 + $0x50] sm:$0xff] %v804
    %815 = vst [vmem:[#allocation3 + $0x58] sm:$0xff] %v805
    %816 = vst [vmem:[#allocation3 + $0x60] sm:$0xff] %v806
    %817 = vst [vmem:[#allocation3 + $0x68] sm:$0xff] %v807
    %818 = vst [vmem:[#allocation3 + $0x70] sm:$0xff] %v808
    %v819 = vld [vmem:[#allocation2] sm:$0xff]
    %v820 = vld [vmem:[#allocation2 + $0x8] sm:$0xff]
    %v821 = vld [vmem:[#allocation2 + $0x10] sm:$0xff]
    %v822 = vld [vmem:[#allocation2 + $0x18] sm:$0xff]
    %v823 = vld [vmem:[#allocation2 + $0x20] sm:$0xff]
    %v824 = vld [vmem:[#allocation2 + $0x28] sm:$0xff]
    %831 = vrot.lane.b32.xlu0 %v819, 110
    %v832 = vpop.permute.xlu0 %831
    %833 = vrot.lane.b32.xlu0 %v820, 110
    %v834 = vpop.permute.xlu0 %833
    %835 = vrot.lane.b32.xlu0 %v821, 110
    %v836 = vpop.permute.xlu0 %835
    %837 = vrot.lane.b32.xlu0 %v822, 110
    %v838 = vpop.permute.xlu0 %837
    %839 = vrot.lane.b32.xlu0 %v823, 110
    %v840 = vpop.permute.xlu0 %839
    %841 = vrot.lane.b32.xlu0 %v824, 110
    %v842 = vpop.permute.xlu0 %841
    %v843 = vsel %vm173, %v832, %v834
    %v844 = vsel %vm173, %v834, %v836
    %v845 = vsel %vm173, %v836, %v838
    %v846 = vsel %vm173, %v838, %v840
    %v847 = vsel %vm173, %v840, %v842
    %853 = vst [vmem:[#allocation3 + $0x78] sm:$0xff] %v843
    %854 = vst [vmem:[#allocation3 + $0x80] sm:$0xff] %v844
    %855 = vst [vmem:[#allocation3 + $0x88] sm:$0xff] %v845
    %856 = vst [vmem:[#allocation3 + $0x90] sm:$0xff] %v846
    %857 = vst [vmem:[#allocation3 + $0x98] sm:$0xff] %v847
    %v858 = vld [vmem:[#allocation2] sm:$0xff]
    %v859 = vld [vmem:[#allocation2 + $0x8] sm:$0xff]
    %v860 = vld [vmem:[#allocation2 + $0x10] sm:$0xff]
    %v861 = vld [vmem:[#allocation2 + $0x18] sm:$0xff]
    %v862 = vld [vmem:[#allocation2 + $0x20] sm:$0xff]
    %v863 = vld [vmem:[#allocation2 + $0x28] sm:$0xff]
    %870 = vrot.lane.b32.xlu0 %v858, 109
    %v871 = vpop.permute.xlu0 %870
    %872 = vrot.lane.b32.xlu0 %v859, 109
    %v873 = vpop.permute.xlu0 %872
    %874 = vrot.lane.b32.xlu0 %v860, 109
    %v875 = vpop.permute.xlu0 %874
    %876 = vrot.lane.b32.xlu0 %v861, 109
    %v877 = vpop.permute.xlu0 %876
    %878 = vrot.lane.b32.xlu0 %v862, 109
    %v879 = vpop.permute.xlu0 %878
    %880 = vrot.lane.b32.xlu0 %v863, 109
    %v881 = vpop.permute.xlu0 %880
    %v882 = vsel %vm213, %v871, %v873
    %v883 = vsel %vm213, %v873, %v875
    %v884 = vsel %vm213, %v875, %v877
    %v885 = vsel %vm213, %v877, %v879
    %v886 = vsel %vm213, %v879, %v881
    %892 = vst [vmem:[#allocation3 + $0xa0] sm:$0xff] %v882
    %893 = vst [vmem:[#allocation3 + $0xa8] sm:$0xff] %v883
    %894 = vst [vmem:[#allocation3 + $0xb0] sm:$0xff] %v884
    %895 = vst [vmem:[#allocation3 + $0xb8] sm:$0xff] %v885
    %896 = vst [vmem:[#allocation3 + $0xc0] sm:$0xff] %v886
    %v897 = vld [vmem:[#allocation2] sm:$0xff]
    %v898 = vld [vmem:[#allocation2 + $0x8] sm:$0xff]
    %v899 = vld [vmem:[#allocation2 + $0x10] sm:$0xff]
    %v900 = vld [vmem:[#allocation2 + $0x18] sm:$0xff]
    %v901 = vld [vmem:[#allocation2 + $0x20] sm:$0xff]
    %v902 = vld [vmem:[#allocation2 + $0x28] sm:$0xff]
    %909 = vrot.lane.b32.xlu0 %v897, 108
    %v910 = vpop.permute.xlu0 %909
    %911 = vrot.lane.b32.xlu0 %v898, 108
    %v912 = vpop.permute.xlu0 %911
    %913 = vrot.lane.b32.xlu0 %v899, 108
    %v914 = vpop.permute.xlu0 %913
    %915 = vrot.lane.b32.xlu0 %v900, 108
    %v916 = vpop.permute.xlu0 %915
    %917 = vrot.lane.b32.xlu0 %v901, 108
    %v918 = vpop.permute.xlu0 %917
    %919 = vrot.lane.b32.xlu0 %v902, 108
    %v920 = vpop.permute.xlu0 %919
    %v921 = vsel %vm253, %v910, %v912
    %v922 = vsel %vm253, %v912, %v914
    %v923 = vsel %vm253, %v914, %v916
    %v924 = vsel %vm253, %v916, %v918
    %v925 = vsel %vm253, %v918, %v920
    %931 = vst [vmem:[#allocation3 + $0xc8] sm:$0xff] %v921
    %932 = vst [vmem:[#allocation3 + $0xd0] sm:$0xff] %v922
    %933 = vst [vmem:[#allocation3 + $0xd8] sm:$0xff] %v923
    %934 = vst [vmem:[#allocation3 + $0xe0] sm:$0xff] %v924
    %935 = vst [vmem:[#allocation3 + $0xe8] sm:$0xff] %v925
    %v936 = vld [vmem:[#allocation2] sm:$0xff]
    %v937 = vld [vmem:[#allocation2 + $0x8] sm:$0xff]
    %v938 = vld [vmem:[#allocation2 + $0x10] sm:$0xff]
    %v939 = vld [vmem:[#allocation2 + $0x18] sm:$0xff]
    %v940 = vld [vmem:[#allocation2 + $0x20] sm:$0xff]
    %v941 = vld [vmem:[#allocation2 + $0x28] sm:$0xff]
    %948 = vrot.lane.b32.xlu0 %v936, 92
    %v949 = vpop.permute.xlu0 %948
    %950 = vrot.lane.b32.xlu0 %v937, 92
    %v951 = vpop.permute.xlu0 %950
    %952 = vrot.lane.b32.xlu0 %v938, 92
    %v953 = vpop.permute.xlu0 %952
    %954 = vrot.lane.b32.xlu0 %v939, 92
    %v955 = vpop.permute.xlu0 %954
    %956 = vrot.lane.b32.xlu0 %v940, 92
    %v957 = vpop.permute.xlu0 %956
    %958 = vrot.lane.b32.xlu0 %v941, 92
    %v959 = vpop.permute.xlu0 %958
    %v960 = vsel %vm293, %v949, %v951
    %v961 = vsel %vm293, %v951, %v953
    %v962 = vsel %vm293, %v953, %v955
    %v963 = vsel %vm293, %v955, %v957
    %v964 = vsel %vm293, %v957, %v959
    %970 = vst [vmem:[#allocation3 + $0xf0] sm:$0xff] %v960
    %971 = vst [vmem:[#allocation3 + $0xf8] sm:$0xff] %v961
    %972 = vst [vmem:[#allocation3 + $0x100] sm:$0xff] %v962
    %973 = vst [vmem:[#allocation3 + $0x108] sm:$0xff] %v963
    %974 = vst [vmem:[#allocation3 + $0x110] sm:$0xff] %v964
    %v975 = vld [vmem:[#allocation2] sm:$0xff]
    %v976 = vld [vmem:[#allocation2 + $0x8] sm:$0xff]
    %v977 = vld [vmem:[#allocation2 + $0x10] sm:$0xff]
    %v978 = vld [vmem:[#allocation2 + $0x18] sm:$0xff]
    %v979 = vld [vmem:[#allocation2 + $0x20] sm:$0xff]
    %v980 = vld [vmem:[#allocation2 + $0x28] sm:$0xff]
    %987 = vrot.lane.b32.xlu0 %v975, 91
    %v988 = vpop.permute.xlu0 %987
    %989 = vrot.lane.b32.xlu0 %v976, 91
    %v990 = vpop.permute.xlu0 %989
    %991 = vrot.lane.b32.xlu0 %v977, 91
    %v992 = vpop.permute.xlu0 %991
    %993 = vrot.lane.b32.xlu0 %v978, 91
    %v994 = vpop.permute.xlu0 %993
    %995 = vrot.lane.b32.xlu0 %v979, 91
    %v996 = vpop.permute.xlu0 %995
    %997 = vrot.lane.b32.xlu0 %v980, 91
    %v998 = vpop.permute.xlu0 %997
    %v999 = vsel %vm333, %v988, %v990
    %v1000 = vsel %vm333, %v990, %v992
    %v1001 = vsel %vm333, %v992, %v994
    %v1002 = vsel %vm333, %v994, %v996
    %v1003 = vsel %vm333, %v996, %v998
    %1009 = vst [vmem:[#allocation3 + $0x118] sm:$0xff] %v999
    %1010 = vst [vmem:[#allocation3 + $0x120] sm:$0xff] %v1000
    %1011 = vst [vmem:[#allocation3 + $0x128] sm:$0xff] %v1001
    %1012 = vst [vmem:[#allocation3 + $0x130] sm:$0xff] %v1002
    %1013 = vst [vmem:[#allocation3 + $0x138] sm:$0xff] %v1003
    %v1014 = vld [vmem:[#allocation2] sm:$0xff]
    %v1015 = vld [vmem:[#allocation2 + $0x8] sm:$0xff]
    %v1016 = vld [vmem:[#allocation2 + $0x10] sm:$0xff]
    %v1017 = vld [vmem:[#allocation2 + $0x18] sm:$0xff]
    %v1018 = vld [vmem:[#allocation2 + $0x20] sm:$0xff]
    %v1019 = vld [vmem:[#allocation2 + $0x28] sm:$0xff]
    %1026 = vrot.lane.b32.xlu0 %v1014, 90
    %v1027 = vpop.permute.xlu0 %1026
    %1028 = vrot.lane.b32.xlu0 %v1015, 90
    %v1029 = vpop.permute.xlu0 %1028
    %1030 = vrot.lane.b32.xlu0 %v1016, 90
    %v1031 = vpop.permute.xlu0 %1030
    %1032 = vrot.lane.b32.xlu0 %v1017, 90
    %v1033 = vpop.permute.xlu0 %1032
    %1034 = vrot.lane.b32.xlu0 %v1018, 90
    %v1035 = vpop.permute.xlu0 %1034
    %1036 = vrot.lane.b32.xlu0 %v1019, 90
    %v1037 = vpop.permute.xlu0 %1036
    %v1038 = vsel %vm373, %v1027, %v1029
    %v1039 = vsel %vm373, %v1029, %v1031
    %v1040 = vsel %vm373, %v1031, %v1033
    %v1041 = vsel %vm373, %v1033, %v1035
    %v1042 = vsel %vm373, %v1035, %v1037
    %1048 = vst [vmem:[#allocation3 + $0x140] sm:$0xff] %v1038
    %1049 = vst [vmem:[#allocation3 + $0x148] sm:$0xff] %v1039
    %1050 = vst [vmem:[#allocation3 + $0x150] sm:$0xff] %v1040
    %1051 = vst [vmem:[#allocation3 + $0x158] sm:$0xff] %v1041
    %1052 = vst [vmem:[#allocation3 + $0x160] sm:$0xff] %v1042
    %v1053 = vld [vmem:[%s6] sm:$0xf]
    %v1054 = vld [vmem:[#allocation3] sm:$0xff]
    %v1055 = vld [vmem:[#allocation3 + $0x8] sm:$0xff]
    %v1056 = vld [vmem:[#allocation3 + $0x10] sm:$0xff]
    %v1057 = vld [vmem:[#allocation3 + $0x18] sm:$0xff]
    %v1058 = vld [vmem:[#allocation3 + $0x20] sm:$0xff]
    %v1059 = vld [vmem:[#allocation3 + $0x28] sm:$0xff]
    %v1060 = vld [vmem:[#allocation3 + $0x30] sm:$0xff]
    %v1061 = vld [vmem:[#allocation3 + $0x38] sm:$0xff]
    %v1062 = vld [vmem:[#allocation3 + $0x40] sm:$0xff]
    %v1063 = vld [vmem:[#allocation3 + $0x48] sm:$0xff]
    %v1064 = vld [vmem:[#allocation3 + $0x50] sm:$0xff]
    %v1065 = vld [vmem:[#allocation3 + $0x58] sm:$0xff]
    %v1066 = vld [vmem:[#allocation3 + $0x60] sm:$0xff]
    %v1067 = vld [vmem:[#allocation3 + $0x68] sm:$0xff]
    %v1068 = vld [vmem:[#allocation3 + $0x70] sm:$0xff]
    %v1069 = vld [vmem:[#allocation3 + $0x78] sm:$0xff]
    %v1070 = vld [vmem:[#allocation3 + $0x80] sm:$0xff]
    %v1071 = vld [vmem:[#allocation3 + $0x88] sm:$0xff]
    %v1072 = vld [vmem:[#allocation3 + $0x90] sm:$0xff]
    %v1073 = vld [vmem:[#allocation3 + $0x98] sm:$0xff]
    %v1074 = vld [vmem:[#allocation3 + $0xa0] sm:$0xff]
    %v1075 = vld [vmem:[#allocation3 + $0xa8] sm:$0xff]
    %v1076 = vld [vmem:[#allocation3 + $0xb0] sm:$0xff]
    %v1077 = vld [vmem:[#allocation3 + $0xb8] sm:$0xff]
    %v1078 = vld [vmem:[#allocation3 + $0xc0] sm:$0xff]
    %v1079 = vld [vmem:[#allocation3 + $0xc8] sm:$0xff]
    %v1080 = vld [vmem:[#allocation3 + $0xd0] sm:$0xff]
    %v1081 = vld [vmem:[#allocation3 + $0xd8] sm:$0xff]
    %v1082 = vld [vmem:[#allocation3 + $0xe0] sm:$0xff]
    %v1083 = vld [vmem:[#allocation3 + $0xe8] sm:$0xff]
    %v1084 = vld [vmem:[#allocation3 + $0xf0] sm:$0xff]
    %v1085 = vld [vmem:[#allocation3 + $0xf8] sm:$0xff]
    %v1086 = vld [vmem:[#allocation3 + $0x100] sm:$0xff]
    %v1087 = vld [vmem:[#allocation3 + $0x108] sm:$0xff]
    %v1088 = vld [vmem:[#allocation3 + $0x110] sm:$0xff]
    %v1089 = vld [vmem:[#allocation3 + $0x118] sm:$0xff]
    %v1090 = vld [vmem:[#allocation3 + $0x120] sm:$0xff]
    %v1091 = vld [vmem:[#allocation3 + $0x128] sm:$0xff]
    %v1092 = vld [vmem:[#allocation3 + $0x130] sm:$0xff]
    %v1093 = vld [vmem:[#allocation3 + $0x138] sm:$0xff]
    %v1094 = vld [vmem:[#allocation3 + $0x140] sm:$0xff]
    %v1095 = vld [vmem:[#allocation3 + $0x148] sm:$0xff]
    %v1096 = vld [vmem:[#allocation3 + $0x150] sm:$0xff]
    %v1097 = vld [vmem:[#allocation3 + $0x158] sm:$0xff]
    %v1098 = vld [vmem:[#allocation3 + $0x160] sm:$0xff]
    %v1099 = vpack.c.bf16 %v1059, %v1054
    %v1100 = vpack.c.bf16 %v1060, %v1055
    %v1101 = vpack.c.bf16 %v1061, %v1056
    %v1102 = vpack.c.bf16 %v1062, %v1057
    %v1103 = vpack.c.bf16 %v1063, %v1058
    %v1104 = vpack.c.bf16 %v1069, %v1064
    %v1105 = vpack.c.bf16 %v1070, %v1065
    %v1106 = vpack.c.bf16 %v1071, %v1066
    %v1107 = vpack.c.bf16 %v1072, %v1067
    %v1108 = vpack.c.bf16 %v1073, %v1068
    %v1109 = vpack.c.bf16 %v1079, %v1074
    %v1110 = vpack.c.bf16 %v1080, %v1075
    %v1111 = vpack.c.bf16 %v1081, %v1076
    %v1112 = vpack.c.bf16 %v1082, %v1077
    %v1113 = vpack.c.bf16 %v1083, %v1078
    %v1114 = vpack.c.bf16 %v1089, %v1084
    %v1115 = vpack.c.bf16 %v1090, %v1085
    %v1116 = vpack.c.bf16 %v1091, %v1086
    %v1117 = vpack.c.bf16 %v1092, %v1087
    %v1118 = vpack.c.bf16 %v1093, %v1088
    %v1119 = vpack.c.bf16 %v1094, %v1094
    %v1120 = vpack.c.bf16 %v1095, %v1095
    %v1121 = vpack.c.bf16 %v1096, %v1096
    %v1122 = vpack.c.bf16 %v1097, %v1097
    %v1123 = vpack.c.bf16 %v1098, %v1098
    %v1125 = vsel %vm460, %v1053, 0
    %v1128 = vsel %vm464, %v1119, 0
    %v1131 = vsel %vm464, %v1120, 0
    %v1134 = vsel %vm464, %v1121, 0
    %v1137 = vsel %vm464, %v1122, 0
    %v1140 = vsel %vm464, %v1123, 0
    %1142 = vmatprep.subr.bf16.mxu0 %v1100
    %1143 = vmatpush1.bf16.msra.mxu0 %v1099
    %1144 = vmatprep.subr.bf16.mxu0 %v1105
    %1145 = vmatpush1.bf16.msra.mxu0 %v1104
    %1146 = vmatprep.subr.bf16.mxu0 %v1110
    %1147 = vmatpush1.bf16.msra.mxu0 %v1109
    %1148 = vmatprep.subr.bf16.mxu0 %v1115
    %1149 = vmatpush1.bf16.msra.mxu0 %v1114
    %1150 = vmatprep.subr.bf16.mxu0 %v1131
    %1151 = vmatpush1.bf16.msra.mxu0 %v1128
    %1152 = vmatprep.subr.bf16.mxu0 0
    %1153 = vmatpush1.bf16.msra.mxu0 0
    %1154 = vmatprep.subr.bf16.mxu0 0
    %1155 = vmatpush1.bf16.msra.mxu0 0
    %1156 = vmatprep.subr.bf16.mxu0 0
    %1157 = vmatpush1.bf16.msra.mxu0 0
    %1158 = vmatprep.subr.bf16.mxu0 0
    %1159 = vmatpush1.bf16.msra.mxu0 0
    %1160 = vmatprep.subr.bf16.mxu0 0
    %1161 = vmatpush1.bf16.msra.mxu0 0
    %1162 = vmatprep.subr.bf16.mxu0 0
    %1163 = vmatpush1.bf16.msra.mxu0 0
    %1164 = vmatprep.subr.bf16.mxu0 0
    %1165 = vmatpush1.bf16.msra.mxu0 0
    %1166 = vmatprep.subr.bf16.mxu0 0
    %1167 = vmatpush1.bf16.msra.mxu0 0
    %1168 = vmatprep.subr.bf16.mxu0 0
    %1169 = vmatpush1.bf16.msra.mxu0 0
    %1170 = vmatprep.subr.bf16.mxu0 0
    %1171 = vmatpush1.bf16.msra.mxu0 0
    %1172 = vmatprep.subr.bf16.mxu0 0
    %1173 = vmatpush1.bf16.msra.mxu0 0
    %1174 = vmatprep.mubr.bf16.mxu0 0
    %1175 = vmatmul.mubr.bf16.gmra.mrb[0].mxu0 %v1125
    %v1176 = vpop.f32.mrb[0].mxu0
    %v1177 = vadd.f32 0.0, %v1176
    %v1178 = vpop.f32.mrb[0].mxu0
    %v1179 = vadd.f32 0.0, %v1178
    %v1180 = vpop.f32.mrb[0].mxu0
    %v1181 = vpop.f32.mrb[0].mxu0
    %1182 = vdwg.mxu0
    %1183 = vmatprep.subr.bf16.mxu0 %v1102
    %1184 = vmatpush1.bf16.msra.mxu0 %v1101
    %1185 = vmatprep.subr.bf16.mxu0 %v1107
    %1186 = vmatpush1.bf16.msra.mxu0 %v1106
    %1187 = vmatprep.subr.bf16.mxu0 %v1112
    %1188 = vmatpush1.bf16.msra.mxu0 %v1111
    %1189 = vmatprep.subr.bf16.mxu0 %v1117
    %1190 = vmatpush1.bf16.msra.mxu0 %v1116
    %1191 = vmatprep.subr.bf16.mxu0 %v1137
    %1192 = vmatpush1.bf16.msra.mxu0 %v1134
    %1193 = vmatprep.subr.bf16.mxu0 0
    %1194 = vmatpush1.bf16.msra.mxu0 0
    %1195 = vmatprep.subr.bf16.mxu0 0
    %1196 = vmatpush1.bf16.msra.mxu0 0
    %1197 = vmatprep.subr.bf16.mxu0 0
    %1198 = vmatpush1.bf16.msra.mxu0 0
    %1199 = vmatprep.subr.bf16.mxu0 0
    %1200 = vmatpush1.bf16.msra.mxu0 0
    %1201 = vmatprep.subr.bf16.mxu0 0
    %1202 = vmatpush1.bf16.msra.mxu0 0
    %1203 = vmatprep.subr.bf16.mxu0 0
    %1204 = vmatpush1.bf16.msra.mxu0 0
    %1205 = vmatprep.subr.bf16.mxu0 0
    %1206 = vmatpush1.bf16.msra.mxu0 0
    %1207 = vmatprep.subr.bf16.mxu0 0
    %1208 = vmatpush1.bf16.msra.mxu0 0
    %1209 = vmatprep.subr.bf16.mxu0 0
    %1210 = vmatpush1.bf16.msra.mxu0 0
    %1211 = vmatprep.subr.bf16.mxu0 0
    %1212 = vmatpush1.bf16.msra.mxu0 0
    %1213 = vmatprep.subr.bf16.mxu0 0
    %1214 = vmatpush1.bf16.msra.mxu0 0
    %1215 = vmatprep.mubr.bf16.mxu0 0
    %1216 = vmatmul.mubr.bf16.gmra.mrb[0].mxu0 %v1125
    %v1217 = vpop.f32.mrb[0].mxu0
    %v1218 = vadd.f32 0.0, %v1217
    %v1219 = vpop.f32.mrb[0].mxu0
    %v1220 = vadd.f32 0.0, %v1219
    %v1221 = vpop.f32.mrb[0].mxu0
    %v1222 = vpop.f32.mrb[0].mxu0
    %1223 = vdwg.mxu0
    %1224 = vmatprep.subr.bf16.mxu0 0
    %1225 = vmatpush1.bf16.msra.mxu0 %v1103
    %1226 = vmatprep.subr.bf16.mxu0 0
    %1227 = vmatpush1.bf16.msra.mxu0 %v1108
    %1228 = vmatprep.subr.bf16.mxu0 0
    %1229 = vmatpush1.bf16.msra.mxu0 %v1113
    %1230 = vmatprep.subr.bf16.mxu0 0
    %1231 = vmatpush1.bf16.msra.mxu0 %v1118
    %1232 = vmatprep.subr.bf16.mxu0 0
    %1233 = vmatpush1.bf16.msra.mxu0 %v1140
    %1234 = vmatprep.subr.bf16.mxu0 0
    %1235 = vmatpush1.bf16.msra.mxu0 0
    %1236 = vmatprep.subr.bf16.mxu0 0
    %1237 = vmatpush1.bf16.msra.mxu0 0
    %1238 = vmatprep.subr.bf16.mxu0 0
    %1239 = vmatpush1.bf16.msra.mxu0 0
    %1240 = vmatprep.subr.bf16.mxu0 0
    %1241 = vmatpush1.bf16.msra.mxu0 0
    %1242 = vmatprep.subr.bf16.mxu0 0
    %1243 = vmatpush1.bf16.msra.mxu0 0
    %1244 = vmatprep.subr.bf16.mxu0 0
    %1245 = vmatpush1.bf16.msra.mxu0 0
    %1246 = vmatprep.subr.bf16.mxu0 0
    %1247 = vmatpush1.bf16.msra.mxu0 0
    %1248 = vmatprep.subr.bf16.mxu0 0
    %1249 = vmatpush1.bf16.msra.mxu0 0
    %1250 = vmatprep.subr.bf16.mxu0 0
    %1251 = vmatpush1.bf16.msra.mxu0 0
    %1252 = vmatprep.subr.bf16.mxu0 0
    %1253 = vmatpush1.bf16.msra.mxu0 0
    %1254 = vmatprep.subr.bf16.mxu0 0
    %1255 = vmatpush1.bf16.msra.mxu0 0
    %1256 = vmatprep.mubr.bf16.mxu0 0
    %1257 = vmatmul.mubr.bf16.gmra.mrb[0].mxu0 %v1125
    %v1258 = vpop.f32.mrb[0].mxu0
    %v1259 = vadd.f32 0.0, %v1258
    %v1260 = vpop.f32.mrb[0].mxu0
    %v1261 = vpop.f32.mrb[0].mxu0
    %v1262 = vpop.f32.mrb[0].mxu0
    %1263 = vdwg.mxu0
    %v1264 = vmul.f32 %v1177, %v606
    %v1265 = vmul.f32 %v1179, %v610
    %v1266 = vmul.f32 %v1218, %v614
    %v1267 = vmul.f32 %v1220, %v618
    %v1268 = vmul.f32 %v1259, %v622
    %v1269 = vadd.f32 %v1264, %v1265
    %v1270 = vadd.f32 %v1269, %v1266
    %v1271 = vadd.f32 %v1270, %v1267
    %v1272 = vadd.f32 %v1271, %v1268
    %1273 = vadd.xlane.f32.xlu0 %v1272
    %v1274 = vpop.xlane.xlu0 %1273
    %v1275 = vmul.f32 %v1274, 0.001953125
    %v1276 = vmul.f32 %v1264, %v1177
    %v1277 = vmul.f32 %v1265, %v1179
    %v1278 = vmul.f32 %v1266, %v1218
    %v1279 = vmul.f32 %v1267, %v1220
    %v1280 = vmul.f32 %v1268, %v1259
    %v1281 = vadd.f32 %v1276, %v1277
    %v1282 = vadd.f32 %v1281, %v1278
    %v1283 = vadd.f32 %v1282, %v1279
    %v1284 = vadd.f32 %v1283, %v1280
    %1285 = vadd.xlane.f32.xlu0 %v1284
    %v1286 = vpop.xlane.xlu0 %1285
    %v1287 = vmul.f32 %v1286, 0.001953125
    %v1288 = vmul.f32 %v1275, %v1275
    %v1289 = vsub.f32 %v1287, %v1288
    %v1290 = vmax.f32 %v1289, 0.0
    %v1291 = vld [vmem:[%s7] sm:$0xff]
    %v1292 = vadd.f32 %v1290, 1e-05
    %v1293 = vrsqrt.pop %v1292
    %v1294 = vmul.f32 %v1291, %v1293
    %v1295 = vld [vmem:[%s8] sm:$0xff]
    %v1296 = vmul.f32 %v1275, %v1294
    %v1297 = vsub.f32 %v1295, %v1296
    %1299 = vset.pattern.permute.xlu0 0
    %1300 = vperm.xlu0 %1299, %v1294
    %v1301 = vpop.permute.xlu0 %1300
    %v1303 = vmul.f32 %v1177, %v1301
    %v1304 = vmul.f32 %v1179, %v1301
    %v1305 = vmul.f32 %v1218, %v1301
    %v1306 = vmul.f32 %v1220, %v1301
    %v1307 = vmul.f32 %v1259, %v1301
    %1309 = vset.pattern.permute.xlu0 0
    %1310 = vperm.xlu0 %1309, %v1297
    %v1311 = vpop.permute.xlu0 %1310
    %v1313 = vadd.f32 %v1303, %v1311
    %v1314 = vadd.f32 %v1304, %v1311
    %v1315 = vadd.f32 %v1305, %v1311
    %v1316 = vadd.f32 %v1306, %v1311
    %v1317 = vadd.f32 %v1307, %v1311
    %v1318 = vld [vmem:[#allocation7] sm:$0xff]
    %v1319 = vld [vmem:[#allocation7 + $0x8] sm:$0xff]
    %v1320 = vld [vmem:[#allocation7 + $0x10] sm:$0xff]
    %v1321 = vld [vmem:[#allocation7 + $0x18] sm:$0xff]
    %v1322 = vld [vmem:[#allocation7 + $0x20] sm:$0xff]
    %v1323 = vadd.f32 %v1313, %v1318
    %v1324 = vadd.f32 %v1314, %v1319
    %v1325 = vadd.f32 %v1315, %v1320
    %v1326 = vadd.f32 %v1316, %v1321
    %v1327 = vadd.f32 %v1317, %v1322
    %v1328 = vmax.f32 %v1323, 0.0
    %v1329 = vmax.f32 %v1324, 0.0
    %v1330 = vmax.f32 %v1325, 0.0
    %v1331 = vmax.f32 %v1326, 0.0
    %v1332 = vmax.f32 %v1327, 0.0
    %1333 = vst [vmem:[#allocation9] sm:$0xff] %v1328
    %1334 = vst [vmem:[#allocation9 + $0x8] sm:$0xff] %v1329
    %1335 = vst [vmem:[#allocation9 + $0x10] sm:$0xff] %v1330
    %1336 = vst [vmem:[#allocation9 + $0x18] sm:$0xff] %v1331
    %1337 = vst [vmem:[#allocation9 + $0x20] sm:$0xff] %v1332
    // Predicated region
    $region46: #{tpu_custom_call.1} parent=1 // pred_check
      _
    $region47: #{tpu_custom_call.1} parent=1 // pred_check_branch
      %1339 = sbr.rel (0) target = $region49
    $region48: #{tpu_custom_call.1} parent=1 // pred_region
      %s1341 = ssub.s32 640, 640
      %1342 = vsyncadd [#allocation6], %s1341
      %s1344 = sshll.u32 [#allocation9], 4
      %s1345 = int_to_ptr.vmem [resolvable:$true] %s1344
      %1347 = dma.vmem_to_hbm [thread:$0]  %s1345, 640, %s9, [#allocation6]
    $region49: #{tpu_custom_call.1} parent=1 // pred_fallthru
      _
    // Predicated region
    $region50: #{tpu_custom_call.1} parent=1 // pred_check
      _
    $region51: #{tpu_custom_call.1} parent=1 // pred_check_branch
      %1349 = sbr.rel (0) target = $region53
    $region52: #{tpu_custom_call.1} parent=1 // pred_region
      %1350 = dma.done [#allocation6], 640
    $region53: #{tpu_custom_call.1} parent=1 // pred_fallthru
      _
    %1351 = vsyncpa [#allocation5], 1
    %1352 = vsyncpa [#allocation8], 1
    %1353 = vsyncpa [#allocation6], 1

</llo_original>
